<compile_context>
chip_gen: v7x
topology: tpu7x:2x2x1
jax: 0.10.0
libtpu: 0.0.40
codegen_flags: <defaults>
</compile_context>

<pallas_src>
import functools

import jax
import jax.numpy as jnp
from jax.experimental import pallas as pl
from jax.experimental.pallas import tpu as pltpu


def _round_up(x, m):
    return ((x + m - 1) // m) * m


def _resblock_kernel(x1_ref, a_ref, b_ref,
                     w1_ref, b1_ref, w2_ref, b2_ref,
                     gamma_ref, beta_ref, out_ref, *, d, ca, cb, eps):
    x1 = x1_ref[...]                                            # (TB, D) f32

    # s1: Linear(D, 2D) -> ReLU -> Linear(2D, D); bf16 MXU inputs, f32 acc.
    h = jnp.dot(x1.astype(jnp.bfloat16), w1_ref[...],
                preferred_element_type=jnp.float32) + b1_ref[...]
    h = jnp.maximum(h, 0.0)
    x2 = jnp.dot(h.astype(jnp.bfloat16), w2_ref[...],
                 preferred_element_type=jnp.float32) + b2_ref[...]

    r = x1 + x2                                                 # residual (TB, D)
    av = a_ref[...]                                             # (TB, Ca)
    bv = b_ref[...]                                             # (TB, Cb)

    # LayerNorm over the *virtual* concat [r, a, b]: statistics from
    # per-segment partial sums -- the concatenated tensor is never built.
    inv_n = 1.0 / float(d + ca + cb)
    mean = (jnp.sum(r, axis=-1, keepdims=True)
            + jnp.sum(av, axis=-1, keepdims=True)
            + jnp.sum(bv, axis=-1, keepdims=True)) * inv_n
    c_r = r - mean
    c_a = av - mean
    c_b = bv - mean
    var = (jnp.sum(c_r * c_r, axis=-1, keepdims=True)
           + jnp.sum(c_a * c_a, axis=-1, keepdims=True)
           + jnp.sum(c_b * c_b, axis=-1, keepdims=True)) * inv_n
    inv = jax.lax.rsqrt(var + eps)

    g = gamma_ref[...]                                          # (1, d+ca+cb)
    be = beta_ref[...]

    # Write the three output segments directly (no in-kernel concatenate).
    # TODO(synk): at production sizes pad the feature axis so each segment is a
    # multiple of 128 lanes (unmasked vst); at this toy width it is masked.
    out_ref[:, :d] = c_r * inv * g[:, :d] + be[:, :d]
    out_ref[:, d:d + ca] = c_a * inv * g[:, d:d + ca] + be[:, d:d + ca]
    out_ref[:, d + ca:] = c_b * inv * g[:, d + ca:] + be[:, d + ca:]


def resblock(x1, a, b, params, *, tb=512):
    B, D = x1.shape
    Ca = a.shape[-1]
    Cb = b.shape[-1]
    d_total = D + Ca + Cb

    # Batch tile: multiple of 8 sublanes, at most the (padded) batch.
    TB = min(tb, _round_up(B, 8))
    assert TB % 8 == 0, "batch tile must be a multiple of 8"
    B_pad = _round_up(B, TB)
    if B_pad != B:
        pad = ((0, B_pad - B), (0, 0))
        x1 = jnp.pad(x1, pad)
        a = jnp.pad(a, pad)
        b = jnp.pad(b, pad)

    # bf16 weights: halve HBM/VMEM bytes for the resident matmul weights.
    w1 = params["w1"].astype(jnp.bfloat16)
    w2 = params["w2"].astype(jnp.bfloat16)
    b1, b2 = params["b1"], params["b2"]
    gamma, beta = params["gamma"], params["beta"]

    kernel = functools.partial(_resblock_kernel, d=D, ca=Ca, cb=Cb, eps=1e-5)

    def resident(arr):
        # whole-array block, same block every grid step -> stays in VMEM
        return pl.BlockSpec(arr.shape, lambda i: (0, 0))

    out = pl.pallas_call(
        kernel,
        out_shape=jax.ShapeDtypeStruct((B_pad, d_total), jnp.float32),
        grid=(B_pad // TB,),
        in_specs=[
            pl.BlockSpec((TB, D), lambda i: (i, 0)),    # x1 (pipelined)
            pl.BlockSpec((TB, Ca), lambda i: (i, 0)),   # a  (pipelined)
            pl.BlockSpec((TB, Cb), lambda i: (i, 0)),   # b  (pipelined)
            resident(w1),
            resident(b1),
            resident(w2),
            resident(b2),
            resident(gamma),
            resident(beta),
        ],
        out_specs=pl.BlockSpec((TB, d_total), lambda i: (i, 0)),
        compiler_params=pltpu.CompilerParams(
            dimension_semantics=("parallel",),          # megacore on v7x
            vmem_limit_bytes=48 * 1024 * 1024,          # headroom, < v7x 64 MiB
        ),
    )(x1, a, b, w1, b1, w2, b2, gamma, beta)
    return out[:B]


def init_params(key, i_put, c_a, c_b):
    """Deterministic init mirroring nn.Linear / nn.LayerNorm shapes."""
    k1, k2, k3, k4 = jax.random.split(key, 4)
    d_total = i_put + c_a + c_b
    lim1 = 1.0 / jnp.sqrt(i_put)        # fan_in of first Linear
    lim2 = 1.0 / jnp.sqrt(2.0 * i_put)  # fan_in of second Linear
    return {
        # stored as (in, out) = transposed PyTorch layout
        "w1": jax.random.uniform(k1, (i_put, 2 * i_put), jnp.float32, -lim1, lim1),
        "b1": jax.random.uniform(k2, (1, 2 * i_put), jnp.float32, -lim1, lim1),
        "w2": jax.random.uniform(k3, (2 * i_put, i_put), jnp.float32, -lim2, lim2),
        "b2": jax.random.uniform(k4, (1, i_put), jnp.float32, -lim2, lim2),
        # LayerNorm defaults: weight=1, bias=0
        "gamma": jnp.ones((1, d_total), jnp.float32),
        "beta": jnp.zeros((1, d_total), jnp.float32),
    }


def resblock_reference(x1, a, b, p):
    """Pure-JAX f32 reference matching the PyTorch forward."""
    h = jnp.maximum(x1 @ p["w1"] + p["b1"], 0.0)
    x2 = h @ p["w2"] + p["b2"]
    cat = jnp.concatenate([x1 + x2, a, b], axis=-1)
    mean = jnp.mean(cat, axis=-1, keepdims=True)
    var = jnp.mean((cat - mean) ** 2, axis=-1, keepdims=True)
    return (cat - mean) / jnp.sqrt(var + 1e-5) * p["gamma"] + p["beta"]


if __name__ == "__main__":
    B, I_PUT, C_A, C_B = 256, 32, 16, 16

    key = jax.random.PRNGKey(0)
    kx, ka, kb, kp = jax.random.split(key, 4)
    x1 = jax.random.normal(kx, (B, I_PUT), jnp.float32)
    a = jax.random.normal(ka, (B, C_A), jnp.float32)
    b = jax.random.normal(kb, (B, C_B), jnp.float32)
    params = init_params(kp, I_PUT, C_A, C_B)

    # tb=128 -> grid of 2 batch tiles, exercising the pipelined path.
    out = jax.block_until_ready(resblock(x1, a, b, params, tb=128))

    ref = resblock_reference(x1, a, b, params)
    assert out.shape == (B, I_PUT + C_A + C_B)
    # Tolerance relaxed vs the pure-f32 reference because the kernel feeds the
    # MXU bf16 inputs (f32 accumulation / elementwise).
    assert jnp.allclose(out, ref, atol=2e-2, rtol=2e-2), \
        float(jnp.max(jnp.abs(out - ref)))

    print("KERNEL_OK")
</pallas_src>

<mosaic_0001>
module attributes {stable_mosaic.version = 11 : i64} {
  func.func @_resblock_kernel(%arg0: i32, %arg1: memref<128x32xf32, #tpu.memory_space<vmem>>, %arg2: memref<128x16xf32, #tpu.memory_space<vmem>>, %arg3: memref<128x16xf32, #tpu.memory_space<vmem>>, %arg4: memref<32x64xbf16, #tpu.memory_space<vmem>>, %arg5: memref<1x64xf32, #tpu.memory_space<vmem>>, %arg6: memref<64x32xbf16, #tpu.memory_space<vmem>>, %arg7: memref<1x32xf32, #tpu.memory_space<vmem>>, %arg8: memref<1x64xf32, #tpu.memory_space<vmem>>, %arg9: memref<1x64xf32, #tpu.memory_space<vmem>>, %arg10: memref<128x64xf32, #tpu.memory_space<vmem>>) attributes {dimension_semantics = [#tpu.dimension_semantics<parallel>], iteration_bounds = array<i64: 2>, scalar_prefetch = 0 : i64, scratch_operands = 0 : i64, tpu.core_type = #tpu.core_type<tc>, window_params = [{transform_indices = @transform_0, window_bounds = array<i64: 128, 32>}, {transform_indices = @transform_1, window_bounds = array<i64: 128, 16>}, {transform_indices = @transform_2, window_bounds = array<i64: 128, 16>}, {pipeline_mode = #tpu.pipeline_mode<synchronous>, transform_indices = @transform_3, window_bounds = array<i64: 32, 64>}, {pipeline_mode = #tpu.pipeline_mode<synchronous>, transform_indices = @transform_4, window_bounds = array<i64: 1, 64>}, {pipeline_mode = #tpu.pipeline_mode<synchronous>, transform_indices = @transform_5, window_bounds = array<i64: 64, 32>}, {pipeline_mode = #tpu.pipeline_mode<synchronous>, transform_indices = @transform_6, window_bounds = array<i64: 1, 32>}, {pipeline_mode = #tpu.pipeline_mode<synchronous>, transform_indices = @transform_7, window_bounds = array<i64: 1, 64>}, {pipeline_mode = #tpu.pipeline_mode<synchronous>, transform_indices = @transform_8, window_bounds = array<i64: 1, 64>}, {transform_indices = @transform_9, window_bounds = array<i64: 128, 64>}]} {
    %c0 = arith.constant 0 : index
    %c0_0 = arith.constant 0 : index
    %0 = vector.load %arg1[%c0, %c0_0] : memref<128x32xf32, #tpu.memory_space<vmem>>, vector<128x32xf32>
    %1 = arith.truncf %0 : vector<128x32xf32> to vector<128x32xbf16>
    %c0_1 = arith.constant 0 : index
    %c0_2 = arith.constant 0 : index
    %2 = vector.load %arg4[%c0_1, %c0_2] : memref<32x64xbf16, #tpu.memory_space<vmem>>, vector<32x64xbf16>
    %cst = arith.constant dense<0.000000e+00> : vector<128x64xf32>
    %3 = tpu.matmul %1, %2, %cst {dimension_numbers = #tpu.dot_dimension_numbers<[1], [0], [0], [1], [0, 0, 1, 1], [], []>} : vector<128x32xbf16>, vector<32x64xbf16>, vector<128x64xf32> -> vector<128x64xf32>
    %c0_3 = arith.constant 0 : index
    %c0_4 = arith.constant 0 : index
    %4 = vector.load %arg5[%c0_3, %c0_4] : memref<1x64xf32, #tpu.memory_space<vmem>>, vector<1x64xf32>
    %5 = vector.broadcast %4 : vector<1x64xf32> to vector<128x64xf32>
    %6 = arith.addf %3, %5 : vector<128x64xf32>
    %cst_5 = arith.constant 0.000000e+00 : f32
    %7 = vector.broadcast %cst_5 : f32 to vector<128x64xf32>
    %8 = arith.maximumf %6, %7 : vector<128x64xf32>
    %9 = arith.truncf %8 : vector<128x64xf32> to vector<128x64xbf16>
    %c0_6 = arith.constant 0 : index
    %c0_7 = arith.constant 0 : index
    %10 = vector.load %arg6[%c0_6, %c0_7] : memref<64x32xbf16, #tpu.memory_space<vmem>>, vector<64x32xbf16>
    %cst_8 = arith.constant dense<0.000000e+00> : vector<128x32xf32>
    %11 = tpu.matmul %9, %10, %cst_8 {dimension_numbers = #tpu.dot_dimension_numbers<[1], [0], [0], [1], [0, 0, 1, 1], [], []>} : vector<128x64xbf16>, vector<64x32xbf16>, vector<128x32xf32> -> vector<128x32xf32>
    %c0_9 = arith.constant 0 : index
    %c0_10 = arith.constant 0 : index
    %12 = vector.load %arg7[%c0_9, %c0_10] : memref<1x32xf32, #tpu.memory_space<vmem>>, vector<1x32xf32>
    %13 = vector.broadcast %12 : vector<1x32xf32> to vector<128x32xf32>
    %14 = arith.addf %11, %13 : vector<128x32xf32>
    %15 = arith.addf %0, %14 : vector<128x32xf32>
    %c0_11 = arith.constant 0 : index
    %c0_12 = arith.constant 0 : index
    %16 = vector.load %arg2[%c0_11, %c0_12] : memref<128x16xf32, #tpu.memory_space<vmem>>, vector<128x16xf32>
    %c0_13 = arith.constant 0 : index
    %c0_14 = arith.constant 0 : index
    %17 = vector.load %arg3[%c0_13, %c0_14] : memref<128x16xf32, #tpu.memory_space<vmem>>, vector<128x16xf32>
    %cst_15 = arith.constant dense<0.000000e+00> : vector<128xf32>
    %18 = vector.multi_reduction <add>, %15, %cst_15 [1] : vector<128x32xf32> to vector<128xf32>
    %19 = vector.shape_cast %18 : vector<128xf32> to vector<128x1xf32>
    %cst_16 = arith.constant dense<0.000000e+00> : vector<128xf32>
    %20 = vector.multi_reduction <add>, %16, %cst_16 [1] : vector<128x16xf32> to vector<128xf32>
    %21 = vector.shape_cast %20 : vector<128xf32> to vector<128x1xf32>
    %22 = arith.addf %19, %21 : vector<128x1xf32>
    %cst_17 = arith.constant dense<0.000000e+00> : vector<128xf32>
    %23 = vector.multi_reduction <add>, %17, %cst_17 [1] : vector<128x16xf32> to vector<128xf32>
    %24 = vector.shape_cast %23 : vector<128xf32> to vector<128x1xf32>
    %25 = arith.addf %22, %24 : vector<128x1xf32>
    %cst_18 = arith.constant 1.562500e-02 : f32
    %26 = vector.broadcast %cst_18 : f32 to vector<128x1xf32>
    %27 = arith.mulf %25, %26 : vector<128x1xf32>
    %28 = vector.broadcast %27 : vector<128x1xf32> to vector<128x32xf32>
    %29 = arith.subf %15, %28 : vector<128x32xf32>
    %30 = vector.broadcast %27 : vector<128x1xf32> to vector<128x16xf32>
    %31 = arith.subf %16, %30 : vector<128x16xf32>
    %32 = vector.broadcast %27 : vector<128x1xf32> to vector<128x16xf32>
    %33 = arith.subf %17, %32 : vector<128x16xf32>
    %34 = arith.mulf %29, %29 : vector<128x32xf32>
    %cst_19 = arith.constant dense<0.000000e+00> : vector<128xf32>
    %35 = vector.multi_reduction <add>, %34, %cst_19 [1] : vector<128x32xf32> to vector<128xf32>
    %36 = vector.shape_cast %35 : vector<128xf32> to vector<128x1xf32>
    %37 = arith.mulf %31, %31 : vector<128x16xf32>
    %cst_20 = arith.constant dense<0.000000e+00> : vector<128xf32>
    %38 = vector.multi_reduction <add>, %37, %cst_20 [1] : vector<128x16xf32> to vector<128xf32>
    %39 = vector.shape_cast %38 : vector<128xf32> to vector<128x1xf32>
    %40 = arith.addf %36, %39 : vector<128x1xf32>
    %41 = arith.mulf %33, %33 : vector<128x16xf32>
    %cst_21 = arith.constant dense<0.000000e+00> : vector<128xf32>
    %42 = vector.multi_reduction <add>, %41, %cst_21 [1] : vector<128x16xf32> to vector<128xf32>
    %43 = vector.shape_cast %42 : vector<128xf32> to vector<128x1xf32>
    %44 = arith.addf %40, %43 : vector<128x1xf32>
    %cst_22 = arith.constant 1.562500e-02 : f32
    %45 = vector.broadcast %cst_22 : f32 to vector<128x1xf32>
    %46 = arith.mulf %44, %45 : vector<128x1xf32>
    %cst_23 = arith.constant 9.99999974E-6 : f32
    %47 = vector.broadcast %cst_23 : f32 to vector<128x1xf32>
    %48 = arith.addf %46, %47 : vector<128x1xf32>
    %49 = math.rsqrt %48 : vector<128x1xf32>
    %c0_24 = arith.constant 0 : index
    %c0_25 = arith.constant 0 : index
    %50 = vector.load %arg8[%c0_24, %c0_25] : memref<1x64xf32, #tpu.memory_space<vmem>>, vector<1x64xf32>
    %c0_26 = arith.constant 0 : index
    %c0_27 = arith.constant 0 : index
    %51 = vector.load %arg9[%c0_26, %c0_27] : memref<1x64xf32, #tpu.memory_space<vmem>>, vector<1x64xf32>
    %52 = vector.broadcast %49 : vector<128x1xf32> to vector<128x32xf32>
    %53 = arith.mulf %29, %52 : vector<128x32xf32>
    %54 = vector.extract_strided_slice %50 {offsets = [0, 0], sizes = [1, 32], strides = [1, 1]} : vector<1x64xf32> to vector<1x32xf32>
    %55 = vector.broadcast %54 : vector<1x32xf32> to vector<128x32xf32>
    %56 = arith.mulf %53, %55 : vector<128x32xf32>
    %57 = vector.extract_strided_slice %51 {offsets = [0, 0], sizes = [1, 32], strides = [1, 1]} : vector<1x64xf32> to vector<1x32xf32>
    %58 = vector.broadcast %57 : vector<1x32xf32> to vector<128x32xf32>
    %59 = arith.addf %56, %58 : vector<128x32xf32>
    %c0_28 = arith.constant 0 : index
    %c0_29 = arith.constant 0 : index
    %60 = vector.load %arg10[%c0_28, %c0_29] : memref<128x64xf32, #tpu.memory_space<vmem>>, vector<128x32xf32>
    tpu.vector_store %arg10[%c0_28, %c0_29], %59 {strides = array<i32>} : memref<128x64xf32, #tpu.memory_space<vmem>>, vector<128x32xf32>,
    %61 = vector.broadcast %49 : vector<128x1xf32> to vector<128x16xf32>
    %62 = arith.mulf %31, %61 : vector<128x16xf32>
    %63 = vector.extract_strided_slice %50 {offsets = [0, 32], sizes = [1, 16], strides = [1, 1]} : vector<1x64xf32> to vector<1x16xf32>
    %64 = vector.broadcast %63 : vector<1x16xf32> to vector<128x16xf32>
    %65 = arith.mulf %62, %64 : vector<128x16xf32>
    %66 = vector.extract_strided_slice %51 {offsets = [0, 32], sizes = [1, 16], strides = [1, 1]} : vector<1x64xf32> to vector<1x16xf32>
    %67 = vector.broadcast %66 : vector<1x16xf32> to vector<128x16xf32>
    %68 = arith.addf %65, %67 : vector<128x16xf32>
    %c0_30 = arith.constant 0 : index
    %c32 = arith.constant 32 : index
    %69 = vector.load %arg10[%c0_30, %c32] : memref<128x64xf32, #tpu.memory_space<vmem>>, vector<128x16xf32>
    tpu.vector_store %arg10[%c0_30, %c32], %68 {strides = array<i32>} : memref<128x64xf32, #tpu.memory_space<vmem>>, vector<128x16xf32>,
    %70 = vector.broadcast %49 : vector<128x1xf32> to vector<128x16xf32>
    %71 = arith.mulf %33, %70 : vector<128x16xf32>
    %72 = vector.extract_strided_slice %50 {offsets = [0, 48], sizes = [1, 16], strides = [1, 1]} : vector<1x64xf32> to vector<1x16xf32>
    %73 = vector.broadcast %72 : vector<1x16xf32> to vector<128x16xf32>
    %74 = arith.mulf %71, %73 : vector<128x16xf32>
    %75 = vector.extract_strided_slice %51 {offsets = [0, 48], sizes = [1, 16], strides = [1, 1]} : vector<1x64xf32> to vector<1x16xf32>
    %76 = vector.broadcast %75 : vector<1x16xf32> to vector<128x16xf32>
    %77 = arith.addf %74, %76 : vector<128x16xf32>
    %c0_31 = arith.constant 0 : index
    %c48 = arith.constant 48 : index
    %78 = vector.load %arg10[%c0_31, %c48] : memref<128x64xf32, #tpu.memory_space<vmem>>, vector<128x16xf32>
    tpu.vector_store %arg10[%c0_31, %c48], %77 {strides = array<i32>} : memref<128x64xf32, #tpu.memory_space<vmem>>, vector<128x16xf32>,
    return
  }
  func.func @transform_0(%arg0: i32) -> (i32, i32) {
    %c0_i32 = arith.constant 0 : i32
    %c0_i32_0 = arith.constant 0 : i32
    return %arg0, %c0_i32 : i32, i32
  }
  func.func @transform_1(%arg0: i32) -> (i32, i32) {
    %c0_i32 = arith.constant 0 : i32
    %c0_i32_0 = arith.constant 0 : i32
    return %arg0, %c0_i32 : i32, i32
  }
  func.func @transform_2(%arg0: i32) -> (i32, i32) {
    %c0_i32 = arith.constant 0 : i32
    %c0_i32_0 = arith.constant 0 : i32
    return %arg0, %c0_i32 : i32, i32
  }
  func.func @transform_3(%arg0: i32) -> (i32, i32) {
    %c0_i32 = arith.constant 0 : i32
    %c0_i32_0 = arith.constant 0 : i32
    %c0_i32_1 = arith.constant 0 : i32
    return %c0_i32, %c0_i32_0 : i32, i32
  }
  func.func @transform_4(%arg0: i32) -> (i32, i32) {
    %c0_i32 = arith.constant 0 : i32
    %c0_i32_0 = arith.constant 0 : i32
    %c0_i32_1 = arith.constant 0 : i32
    return %c0_i32, %c0_i32_0 : i32, i32
  }
  func.func @transform_5(%arg0: i32) -> (i32, i32) {
    %c0_i32 = arith.constant 0 : i32
    %c0_i32_0 = arith.constant 0 : i32
    %c0_i32_1 = arith.constant 0 : i32
    return %c0_i32, %c0_i32_0 : i32, i32
  }
  func.func @transform_6(%arg0: i32) -> (i32, i32) {
    %c0_i32 = arith.constant 0 : i32
    %c0_i32_0 = arith.constant 0 : i32
    %c0_i32_1 = arith.constant 0 : i32
    return %c0_i32, %c0_i32_0 : i32, i32
  }
  func.func @transform_7(%arg0: i32) -> (i32, i32) {
    %c0_i32 = arith.constant 0 : i32
    %c0_i32_0 = arith.constant 0 : i32
    %c0_i32_1 = arith.constant 0 : i32
    return %c0_i32, %c0_i32_0 : i32, i32
  }
  func.func @transform_8(%arg0: i32) -> (i32, i32) {
    %c0_i32 = arith.constant 0 : i32
    %c0_i32_0 = arith.constant 0 : i32
    %c0_i32_1 = arith.constant 0 : i32
    return %c0_i32, %c0_i32_0 : i32, i32
  }
  func.func @transform_9(%arg0: i32) -> (i32, i32) {
    %c0_i32 = arith.constant 0 : i32
    %c0_i32_0 = arith.constant 0 : i32
    return %arg0, %c0_i32 : i32, i32
  }
}

</mosaic_0001>

<llo_original>
// kernel: tpu_custom_call.1
$region0: #{tpu_custom_call.1}
  #allocation0 [shape = 'u32[]', space=smem, size = 0x4, offset = 0x4, fixed_abs, tag = 'smem constant byte address 0x4 - core index']
  #allocation1 [shape = 'u32[144,128]{1,0:T(1,128)}', space=vmem, size = 0x12000, scoped, tag = 'internal scratch']
  %s0 = inlined_call_operand.vmem [shape: f32[256,32], index: 0, kind: input, shape index: {}]
  %s1 = inlined_call_operand.vmem [shape: f32[256,16], index: 1, kind: input, shape index: {}]
  %s2 = inlined_call_operand.vmem [shape: f32[256,16], index: 2, kind: input, shape index: {}]
  %s3 = inlined_call_operand.vmem [shape: bf16[32,64], index: 3, kind: input, shape index: {}]
  %s4 = inlined_call_operand.vmem [shape: f32[1,64], index: 4, kind: input, shape index: {}]
  %s5 = inlined_call_operand.vmem [shape: bf16[64,32], index: 5, kind: input, shape index: {}]
  %s6 = inlined_call_operand.vmem [shape: f32[1,32], index: 6, kind: input, shape index: {}]
  %s7 = inlined_call_operand.vmem [shape: f32[1,64], index: 7, kind: input, shape index: {}]
  %s8 = inlined_call_operand.vmem [shape: f32[1,64], index: 8, kind: input, shape index: {}]
  %s9 = inlined_call_operand.vmem [shape: f32[256,64], index: 9, kind: output, shape index: {}]
  %s10 = sld [smem:[#allocation0]]
  $region69: #{tpu_custom_call.1} parent=0
    _
  %s12 = ssub.s32 1, %s10
  %s13 = scalar_select 0, %s12, %s10
  loop: start=0, step=1, limit=4
  $region2: #{tpu_custom_call.1} parent=0 // loop_pre_header
    _
  $region3: #{tpu_custom_call.1} parent=0 // loop_header
    %s15 = sphi 0, %s19
    %p16 = scmp.ge.s32.totalorder %s15, 4
    %s25 = sphi 0, %s27
    %s28 = sphi 0, %s25
    %s29 = sphi 0, %s28
    %s45 = sphi 0, %s29
    %s51 = sphi 0, %s53
    %s54 = sphi 0, %s51
    %s55 = sphi 0, %s54
    %s71 = sphi 0, %s55
    %s77 = sphi 0, %s79
    %s80 = sphi 0, %s77
    %s81 = sphi 0, %s80
    %s97 = sphi 0, %s81
    %s101 = sphi 0, %s101
    %s103 = sphi 0, %s101
    %s104 = sphi 0, %s103
    %s118 = sphi 0, %s104
    %s122 = sphi 0, %s122
    %s124 = sphi 0, %s122
    %s125 = sphi 0, %s124
    %s139 = sphi 0, %s125
    %s143 = sphi 0, %s143
    %s145 = sphi 0, %s143
    %s146 = sphi 0, %s145
    %s160 = sphi 0, %s146
    %s164 = sphi 0, %s164
    %s166 = sphi 0, %s164
    %s167 = sphi 0, %s166
    %s181 = sphi 0, %s167
    %s185 = sphi 0, %s185
    %s187 = sphi 0, %s185
    %s188 = sphi 0, %s187
    %s202 = sphi 0, %s188
    %s206 = sphi 0, %s206
    %s208 = sphi 0, %s206
    %s209 = sphi 0, %s208
    %s223 = sphi 0, %s209
    %s229 = sphi 0, %s231
    %s232 = sphi 0, %s229
    %s233 = sphi 0, %s232
    %s249 = sphi 0, %s233
  $region4: #{tpu_custom_call.1} parent=0 // loop_header_branch
    %18 = sbr.rel (%p16) target = $region8
  $region5: #{tpu_custom_call.1} parent=0 // loop_body
    %s20 = ssub.s32 %s15, 1
    %s21 = ssub.s32 %s15, 2
    %s22 = sadd.s32 %s15, 1
    %s23 = ssub.s32 %s15, %s22
    %p24 = scmp.eq.s32.totalorder %s23, 0
    %s26 = sadd.s32 %s25, 1
    %s27 = scalar_select %p24, %s25, %s26
    %p30 = pneg %p24
    %p31 = scmp.eq.s32.totalorder %s15, 1
    %p32 = por %p30, %p31
    %p33 = scmp.ne.s32.totalorder %s25, %s28
    %p34 = scmp.eq.s32.totalorder %s15, 0
    %p35 = por %p33, %p34
    %p36 = scmp.ne.s32.totalorder %s25, %s28
    %p37 = scmp.eq.s32.totalorder %s20, 1
    %p38 = por %p36, %p37
    %p39 = scmp.ne.s32.totalorder %s28, %s29
    %p40 = scmp.eq.s32.totalorder %s20, 0
    %p41 = por %p39, %p40
    %p42 = scmp.ne.s32.totalorder %s28, %s29
    %p43 = scmp.eq.s32.totalorder %s21, 1
    %p44 = por %p42, %p43
    %p46 = scmp.ne.s32.totalorder %s29, %s45
    %p47 = scmp.eq.s32.totalorder %s21, 0
    %p48 = por %p46, %p47
    %s49 = ssub.s32 %s15, %s22
    %p50 = scmp.eq.s32.totalorder %s49, 0
    %s52 = sadd.s32 %s51, 1
    %s53 = scalar_select %p50, %s51, %s52
    %p56 = pneg %p50
    %p57 = scmp.eq.s32.totalorder %s15, 1
    %p58 = por %p56, %p57
    %p59 = scmp.ne.s32.totalorder %s51, %s54
    %p60 = scmp.eq.s32.totalorder %s15, 0
    %p61 = por %p59, %p60
    %p62 = scmp.ne.s32.totalorder %s51, %s54
    %p63 = scmp.eq.s32.totalorder %s20, 1
    %p64 = por %p62, %p63
    %p65 = scmp.ne.s32.totalorder %s54, %s55
    %p66 = scmp.eq.s32.totalorder %s20, 0
    %p67 = por %p65, %p66
    %p68 = scmp.ne.s32.totalorder %s54, %s55
    %p69 = scmp.eq.s32.totalorder %s21, 1
    %p70 = por %p68, %p69
    %p72 = scmp.ne.s32.totalorder %s55, %s71
    %p73 = scmp.eq.s32.totalorder %s21, 0
    %p74 = por %p72, %p73
    %s75 = ssub.s32 %s15, %s22
    %p76 = scmp.eq.s32.totalorder %s75, 0
    %s78 = sadd.s32 %s77, 1
    %s79 = scalar_select %p76, %s77, %s78
    %p82 = pneg %p76
    %p83 = scmp.eq.s32.totalorder %s15, 1
    %p84 = por %p82, %p83
    %p85 = scmp.ne.s32.totalorder %s77, %s80
    %p86 = scmp.eq.s32.totalorder %s15, 0
    %p87 = por %p85, %p86
    %p88 = scmp.ne.s32.totalorder %s77, %s80
    %p89 = scmp.eq.s32.totalorder %s20, 1
    %p90 = por %p88, %p89
    %p91 = scmp.ne.s32.totalorder %s80, %s81
    %p92 = scmp.eq.s32.totalorder %s20, 0
    %p93 = por %p91, %p92
    %p94 = scmp.ne.s32.totalorder %s80, %s81
    %p95 = scmp.eq.s32.totalorder %s21, 1
    %p96 = por %p94, %p95
    %p98 = scmp.ne.s32.totalorder %s81, %s97
    %p99 = scmp.eq.s32.totalorder %s21, 0
    %p100 = por %p98, %p99
    %s102 = sadd.s32 %s101, 1
    %p105 = scmp.eq.s32.totalorder %s15, 1
    %p106 = scmp.ne.s32.totalorder %s101, %s103
    %p107 = scmp.eq.s32.totalorder %s15, 0
    %p108 = por %p106, %p107
    %p109 = scmp.ne.s32.totalorder %s101, %s103
    %p110 = scmp.eq.s32.totalorder %s20, 1
    %p111 = por %p109, %p110
    %p112 = scmp.ne.s32.totalorder %s103, %s104
    %p113 = scmp.eq.s32.totalorder %s20, 0
    %p114 = por %p112, %p113
    %p115 = scmp.ne.s32.totalorder %s103, %s104
    %p116 = scmp.eq.s32.totalorder %s21, 1
    %p117 = por %p115, %p116
    %p119 = scmp.ne.s32.totalorder %s104, %s118
    %p120 = scmp.eq.s32.totalorder %s21, 0
    %p121 = por %p119, %p120
    %s123 = sadd.s32 %s122, 1
    %p126 = scmp.eq.s32.totalorder %s15, 1
    %p127 = scmp.ne.s32.totalorder %s122, %s124
    %p128 = scmp.eq.s32.totalorder %s15, 0
    %p129 = por %p127, %p128
    %p130 = scmp.ne.s32.totalorder %s122, %s124
    %p131 = scmp.eq.s32.totalorder %s20, 1
    %p132 = por %p130, %p131
    %p133 = scmp.ne.s32.totalorder %s124, %s125
    %p134 = scmp.eq.s32.totalorder %s20, 0
    %p135 = por %p133, %p134
    %p136 = scmp.ne.s32.totalorder %s124, %s125
    %p137 = scmp.eq.s32.totalorder %s21, 1
    %p138 = por %p136, %p137
    %p140 = scmp.ne.s32.totalorder %s125, %s139
    %p141 = scmp.eq.s32.totalorder %s21, 0
    %p142 = por %p140, %p141
    %s144 = sadd.s32 %s143, 1
    %p147 = scmp.eq.s32.totalorder %s15, 1
    %p148 = scmp.ne.s32.totalorder %s143, %s145
    %p149 = scmp.eq.s32.totalorder %s15, 0
    %p150 = por %p148, %p149
    %p151 = scmp.ne.s32.totalorder %s143, %s145
    %p152 = scmp.eq.s32.totalorder %s20, 1
    %p153 = por %p151, %p152
    %p154 = scmp.ne.s32.totalorder %s145, %s146
    %p155 = scmp.eq.s32.totalorder %s20, 0
    %p156 = por %p154, %p155
    %p157 = scmp.ne.s32.totalorder %s145, %s146
    %p158 = scmp.eq.s32.totalorder %s21, 1
    %p159 = por %p157, %p158
    %p161 = scmp.ne.s32.totalorder %s146, %s160
    %p162 = scmp.eq.s32.totalorder %s21, 0
    %p163 = por %p161, %p162
    %s165 = sadd.s32 %s164, 1
    %p168 = scmp.eq.s32.totalorder %s15, 1
    %p169 = scmp.ne.s32.totalorder %s164, %s166
    %p170 = scmp.eq.s32.totalorder %s15, 0
    %p171 = por %p169, %p170
    %p172 = scmp.ne.s32.totalorder %s164, %s166
    %p173 = scmp.eq.s32.totalorder %s20, 1
    %p174 = por %p172, %p173
    %p175 = scmp.ne.s32.totalorder %s166, %s167
    %p176 = scmp.eq.s32.totalorder %s20, 0
    %p177 = por %p175, %p176
    %p178 = scmp.ne.s32.totalorder %s166, %s167
    %p179 = scmp.eq.s32.totalorder %s21, 1
    %p180 = por %p178, %p179
    %p182 = scmp.ne.s32.totalorder %s167, %s181
    %p183 = scmp.eq.s32.totalorder %s21, 0
    %p184 = por %p182, %p183
    %s186 = sadd.s32 %s185, 1
    %p189 = scmp.eq.s32.totalorder %s15, 1
    %p190 = scmp.ne.s32.totalorder %s185, %s187
    %p191 = scmp.eq.s32.totalorder %s15, 0
    %p192 = por %p190, %p191
    %p193 = scmp.ne.s32.totalorder %s185, %s187
    %p194 = scmp.eq.s32.totalorder %s20, 1
    %p195 = por %p193, %p194
    %p196 = scmp.ne.s32.totalorder %s187, %s188
    %p197 = scmp.eq.s32.totalorder %s20, 0
    %p198 = por %p196, %p197
    %p199 = scmp.ne.s32.totalorder %s187, %s188
    %p200 = scmp.eq.s32.totalorder %s21, 1
    %p201 = por %p199, %p200
    %p203 = scmp.ne.s32.totalorder %s188, %s202
    %p204 = scmp.eq.s32.totalorder %s21, 0
    %p205 = por %p203, %p204
    %s207 = sadd.s32 %s206, 1
    %p210 = scmp.eq.s32.totalorder %s15, 1
    %p211 = scmp.ne.s32.totalorder %s206, %s208
    %p212 = scmp.eq.s32.totalorder %s15, 0
    %p213 = por %p211, %p212
    %p214 = scmp.ne.s32.totalorder %s206, %s208
    %p215 = scmp.eq.s32.totalorder %s20, 1
    %p216 = por %p214, %p215
    %p217 = scmp.ne.s32.totalorder %s208, %s209
    %p218 = scmp.eq.s32.totalorder %s20, 0
    %p219 = por %p217, %p218
    %p220 = scmp.ne.s32.totalorder %s208, %s209
    %p221 = scmp.eq.s32.totalorder %s21, 1
    %p222 = por %p220, %p221
    %p224 = scmp.ne.s32.totalorder %s209, %s223
    %p225 = scmp.eq.s32.totalorder %s21, 0
    %p226 = por %p224, %p225
    %s227 = ssub.s32 %s15, %s22
    %p228 = scmp.eq.s32.totalorder %s227, 0
    %s230 = sadd.s32 %s229, 1
    %s231 = scalar_select %p228, %s229, %s230
    %p234 = pneg %p228
    %p235 = scmp.eq.s32.totalorder %s15, 1
    %p236 = por %p234, %p235
    %p237 = scmp.ne.s32.totalorder %s229, %s232
    %p238 = scmp.eq.s32.totalorder %s15, 0
    %p239 = por %p237, %p238
    %p240 = scmp.ne.s32.totalorder %s229, %s232
    %p241 = scmp.eq.s32.totalorder %s20, 1
    %p242 = por %p240, %p241
    %p243 = scmp.ne.s32.totalorder %s232, %s233
    %p244 = scmp.eq.s32.totalorder %s20, 0
    %p245 = por %p243, %p244
    %p246 = scmp.ne.s32.totalorder %s232, %s233
    %p247 = scmp.eq.s32.totalorder %s21, 1
    %p248 = por %p246, %p247
    %p250 = scmp.ne.s32.totalorder %s233, %s249
    %p251 = scmp.eq.s32.totalorder %s21, 0
    %p252 = por %p250, %p251
    %p253 = scmp.le.s32.totalorder 1, %s15
    %p254 = scmp.lt.s32.totalorder %s15, 3
    %p255 = pnand %p253, %p254
    %p256 = pneg %p255
    // Predicated region
    $region9: #{tpu_custom_call.1} parent=5 // pred_check
      _
    $region10: #{tpu_custom_call.1} parent=5 // pred_check_branch
      %258 = sbr.rel (%p255) target = $region12
    $region11: #{tpu_custom_call.1} parent=5 // pred_region
      %s259 = ssub.s32 %s15, 1
      // Predicated region
      $region13: #{tpu_custom_call.1} parent=11 // pred_check
        %p260 = pneg %p114
      $region14: #{tpu_custom_call.1} parent=11 // pred_check_branch
        %262 = sbr.rel (%p260) target = $region16
      $region15: #{tpu_custom_call.1} parent=11 // pred_region
        _
      $region16: #{tpu_custom_call.1} parent=11 // pred_fallthru
        _
      // Predicated region
      $region17: #{tpu_custom_call.1} parent=11 // pred_check
        %p263 = pneg %p135
      $region18: #{tpu_custom_call.1} parent=11 // pred_check_branch
        %265 = sbr.rel (%p263) target = $region20
      $region19: #{tpu_custom_call.1} parent=11 // pred_region
        _
      $region20: #{tpu_custom_call.1} parent=11 // pred_fallthru
        _
      // Predicated region
      $region21: #{tpu_custom_call.1} parent=11 // pred_check
        %p266 = pneg %p156
      $region22: #{tpu_custom_call.1} parent=11 // pred_check_branch
        %268 = sbr.rel (%p266) target = $region24
      $region23: #{tpu_custom_call.1} parent=11 // pred_region
        _
      $region24: #{tpu_custom_call.1} parent=11 // pred_fallthru
        _
      // Predicated region
      $region25: #{tpu_custom_call.1} parent=11 // pred_check
        %p269 = pneg %p177
      $region26: #{tpu_custom_call.1} parent=11 // pred_check_branch
        %271 = sbr.rel (%p269) target = $region28
      $region27: #{tpu_custom_call.1} parent=11 // pred_region
        _
      $region28: #{tpu_custom_call.1} parent=11 // pred_fallthru
        _
      // Predicated region
      $region29: #{tpu_custom_call.1} parent=11 // pred_check
        %p272 = pneg %p198
      $region30: #{tpu_custom_call.1} parent=11 // pred_check_branch
        %274 = sbr.rel (%p272) target = $region32
      $region31: #{tpu_custom_call.1} parent=11 // pred_region
        _
      $region32: #{tpu_custom_call.1} parent=11 // pred_fallthru
        _
      // Predicated region
      $region33: #{tpu_custom_call.1} parent=11 // pred_check
        %p275 = pneg %p219
      $region34: #{tpu_custom_call.1} parent=11 // pred_check_branch
        %277 = sbr.rel (%p275) target = $region36
      $region35: #{tpu_custom_call.1} parent=11 // pred_region
        _
      $region36: #{tpu_custom_call.1} parent=11 // pred_fallthru
        _
    $region12: #{tpu_custom_call.1} parent=5 // pred_fallthru
      _
    %p278 = scmp.lt.s32.totalorder %s15, 2
    // Predicated region
    $region37: #{tpu_custom_call.1} parent=5 // pred_check
      %p279 = pneg %p278
    $region38: #{tpu_custom_call.1} parent=5 // pred_check_branch
      %281 = sbr.rel (%p279) target = $region40
    $region39: #{tpu_custom_call.1} parent=5 // pred_region
      // Predicated region
      $region41: #{tpu_custom_call.1} parent=39 // pred_check
        %p282 = pneg %p35
      $region42: #{tpu_custom_call.1} parent=39 // pred_check_branch
        %284 = sbr.rel (%p282) target = $region44
      $region43: #{tpu_custom_call.1} parent=39 // pred_region
        %s285 = smul.u32 16, %s15
        %p286 = scmp.lt.s32.totalorder %s285, 31
        %s287 = scalar_select %p286, %s285, 31
        %s288 = smul.addr %s287, 8
        %s289 = scalar_lea.vmem %s0, %s288
        %s290 = smul.u32 16, %s15
      $region44: #{tpu_custom_call.1} parent=39 // pred_fallthru
        _
      // Predicated region
      $region45: #{tpu_custom_call.1} parent=39 // pred_check
        %p291 = pneg %p61
      $region46: #{tpu_custom_call.1} parent=39 // pred_check_branch
        %293 = sbr.rel (%p291) target = $region48
      $region47: #{tpu_custom_call.1} parent=39 // pred_region
        %s294 = smul.u32 16, %s15
        %p295 = scmp.lt.s32.totalorder %s294, 31
        %s296 = scalar_select %p295, %s294, 31
        %s297 = smul.addr %s296, 8
        %s298 = scalar_lea.vmem %s1, %s297
        %s299 = smul.u32 16, %s15
      $region48: #{tpu_custom_call.1} parent=39 // pred_fallthru
        _
      // Predicated region
      $region49: #{tpu_custom_call.1} parent=39 // pred_check
        %p300 = pneg %p87
      $region50: #{tpu_custom_call.1} parent=39 // pred_check_branch
        %302 = sbr.rel (%p300) target = $region52
      $region51: #{tpu_custom_call.1} parent=39 // pred_region
        %s303 = smul.u32 16, %s15
        %p304 = scmp.lt.s32.totalorder %s303, 31
        %s305 = scalar_select %p304, %s303, 31
        %s306 = smul.addr %s305, 8
        %s307 = scalar_lea.vmem %s2, %s306
        %s308 = smul.u32 16, %s15
      $region52: #{tpu_custom_call.1} parent=39 // pred_fallthru
        _
    $region40: #{tpu_custom_call.1} parent=5 // pred_fallthru
      _
    %p309 = scmp.le.s32.totalorder 1, %s15
    %p310 = scmp.lt.s32.totalorder %s15, 3
    %p311 = pnand %p309, %p310
    %p312 = pneg %p311
    // Predicated region
    $region53: #{tpu_custom_call.1} parent=5 // pred_check
      _
    $region54: #{tpu_custom_call.1} parent=5 // pred_check_branch
      %314 = sbr.rel (%p311) target = $region56
    $region55: #{tpu_custom_call.1} parent=5 // pred_region
      %s315 = ssub.s32 %s15, 1
      %s316 = smul.u32 16, %s20
      %p317 = scmp.lt.s32.totalorder %s316, 31
      %s318 = scalar_select %p317, %s316, 31
      %s319 = smul.addr %s318, 8
      %s320 = scalar_lea.vmem %s0, %s319
      %p321 = pneg %p41
      %p322 = pneg %p38
      %s323 = smul.u32 16, %s20
      %p324 = scmp.lt.s32.totalorder %s323, 31
      %s325 = scalar_select %p324, %s323, 31
      %s326 = smul.addr %s325, 8
      %s327 = scalar_lea.vmem %s1, %s326
      %p328 = pneg %p67
      %p329 = pneg %p64
      %s330 = smul.u32 16, %s20
      %p331 = scmp.lt.s32.totalorder %s330, 31
      %s332 = scalar_select %p331, %s330, 31
      %s333 = smul.addr %s332, 8
      %s334 = scalar_lea.vmem %s2, %s333
      %p335 = pneg %p93
      %p336 = pneg %p90
      %p337 = pneg %p114
      %p338 = pneg %p111
      %p339 = pneg %p135
      %p340 = pneg %p132
      %p341 = pneg %p156
      %p342 = pneg %p153
      %p343 = pneg %p177
      %p344 = pneg %p174
      %p345 = pneg %p198
      %p346 = pneg %p195
      %p347 = pneg %p219
      %p348 = pneg %p216
      %p349 = pneg %p245
      %p350 = pneg %p242
      %s351 = smul.u32 16, %s20
      %p352 = scmp.lt.s32.totalorder %s351, 31
      %s353 = scalar_select %p352, %s351, 31
      %s354 = smul.addr %s353, 8
      %s355 = scalar_lea.vmem %s9, %s354
      %s356 = smul.u32 16, %s20
      %p357 = scmp.lt.s32.totalorder %s356, 31
      %s358 = scalar_select %p357, %s356, 31
      %s359 = smul.addr %s358, 8
      %s360 = scalar_lea.vmem %s0, %s359
      %s361 = smul.u32 16, %s20
      %s362 = smul.u32 16, %s20
      %p363 = scmp.lt.s32.totalorder %s362, 31
      %s364 = scalar_select %p363, %s362, 31
      %s365 = smul.addr %s364, 8
      %s366 = scalar_lea.vmem %s1, %s365
      %s367 = smul.u32 16, %s20
      %s368 = smul.u32 16, %s20
      %p369 = scmp.lt.s32.totalorder %s368, 31
      %s370 = scalar_select %p369, %s368, 31
      %s371 = smul.addr %s370, 8
      %s372 = scalar_lea.vmem %s2, %s371
      %s373 = smul.u32 16, %s20
      %s374 = smul.u32 16, %s20
      %p375 = scmp.lt.s32.totalorder %s374, 31
      %s376 = scalar_select %p375, %s374, 31
      %s377 = smul.addr %s376, 8
      %s378 = scalar_lea.vmem %s9, %s377
      %s379 = smul.u32 16, %s20
      %v381 = vld [vmem:[%s360] sm:$0xff]
      %v382 = vld [vmem:[%s360 + $0x8] sm:$0xff]
      %v383 = vld [vmem:[%s360 + $0x10] sm:$0xff]
      %v384 = vld [vmem:[%s360 + $0x18] sm:$0xff]
      %v385 = vld [vmem:[%s360 + $0x20] sm:$0xff]
      %v386 = vld [vmem:[%s360 + $0x28] sm:$0xff]
      %v387 = vld [vmem:[%s360 + $0x30] sm:$0xff]
      %v388 = vld [vmem:[%s360 + $0x38] sm:$0xff]
      %v389 = vld [vmem:[%s360 + $0x40] sm:$0xff]
      %v390 = vld [vmem:[%s360 + $0x48] sm:$0xff]
      %v391 = vld [vmem:[%s360 + $0x50] sm:$0xff]
      %v392 = vld [vmem:[%s360 + $0x58] sm:$0xff]
      %v393 = vld [vmem:[%s360 + $0x60] sm:$0xff]
      %v394 = vld [vmem:[%s360 + $0x68] sm:$0xff]
      %v395 = vld [vmem:[%s360 + $0x70] sm:$0xff]
      %v396 = vld [vmem:[%s360 + $0x78] sm:$0xff]
      %v397 = vpack.c.bf16 %v382, %v381
      %v398 = vpack.c.bf16 %v384, %v383
      %v399 = vpack.c.bf16 %v386, %v385
      %v400 = vpack.c.bf16 %v388, %v387
      %v401 = vpack.c.bf16 %v390, %v389
      %v402 = vpack.c.bf16 %v392, %v391
      %v403 = vpack.c.bf16 %v394, %v393
      %v404 = vpack.c.bf16 %v396, %v395
      %v405 = vld [vmem:[%s3] sm:$0xf]
      %v406 = vld [vmem:[%s3 + $0x4] sm:$0xf]
      %v407 = vld [vmem:[%s3 + $0x8] sm:$0xf]
      %v408 = vld [vmem:[%s3 + $0xc] sm:$0xf]
      %v409 = vld [vmem:[%s4] sm:$0x1]
      %v411 = vlaneseq
      %v412 = vshrl.u32 %v411, 7
      %v413 = vsub.s32 0, %v412
      %v414 = vrot.slane %v409, %v413
      %v420 = vunpack.c.l.b16 %v405
      %v421 = vunpack.c.l.b16 %v406
      %v422 = vunpack.c.l.b16 %v407
      %v423 = vunpack.c.l.b16 %v408
      %v424 = vpack.c.b16 %v421, %v420
      %v425 = vpack.c.b16 %v423, %v422
      %vm428 = vcmask 261120
      %v430 = vsel %vm428, %v397, 0
      %v433 = vsel %vm428, %v398, 0
      %v436 = vsel %vm428, %v399, 0
      %v439 = vsel %vm428, %v400, 0
      %v442 = vsel %vm428, %v401, 0
      %v445 = vsel %vm428, %v402, 0
      %v448 = vsel %vm428, %v403, 0
      %v451 = vsel %vm428, %v404, 0
      %453 = vmatprep.subr.bf16.mxu0 0
      %454 = vmatpush1.bf16.msra.mxu0 %v424
      %455 = vmatprep.subr.bf16.mxu0 0
      %456 = vmatpush1.bf16.msra.mxu0 %v425
      %457 = vmatprep.subr.bf16.mxu0 0
      %458 = vmatpush1.bf16.msra.mxu0 0
      %459 = vmatprep.subr.bf16.mxu0 0
      %460 = vmatpush1.bf16.msra.mxu0 0
      %461 = vmatprep.subr.bf16.mxu0 0
      %462 = vmatpush1.bf16.msra.mxu0 0
      %463 = vmatprep.subr.bf16.mxu0 0
      %464 = vmatpush1.bf16.msra.mxu0 0
      %465 = vmatprep.subr.bf16.mxu0 0
      %466 = vmatpush1.bf16.msra.mxu0 0
      %467 = vmatprep.subr.bf16.mxu0 0
      %468 = vmatpush1.bf16.msra.mxu0 0
      %469 = vmatprep.subr.bf16.mxu0 0
      %470 = vmatpush1.bf16.msra.mxu0 0
      %471 = vmatprep.subr.bf16.mxu0 0
      %472 = vmatpush1.bf16.msra.mxu0 0
      %473 = vmatprep.subr.bf16.mxu0 0
      %474 = vmatpush1.bf16.msra.mxu0 0
      %475 = vmatprep.subr.bf16.mxu0 0
      %476 = vmatpush1.bf16.msra.mxu0 0
      %477 = vmatprep.subr.bf16.mxu0 0
      %478 = vmatpush1.bf16.msra.mxu0 0
      %479 = vmatprep.subr.bf16.mxu0 0
      %480 = vmatpush1.bf16.msra.mxu0 0
      %481 = vmatprep.subr.bf16.mxu0 0
      %482 = vmatpush1.bf16.msra.mxu0 0
      %483 = vmatprep.subr.bf16.mxu0 0
      %484 = vmatpush1.bf16.msra.mxu0 0
      %485 = vmatprep.mubr.bf16.mxu0 0
      %486 = vmatmul.mubr.bf16.gmra.mrb[0].mxu0 %v430
      %v487 = vpop.f32.mrb[0].mxu0
      %v488 = vadd.f32 %v414, %v487
      %v489 = vpop.f32.mrb[0].mxu0
      %v490 = vpop.f32.mrb[0].mxu0
      %v491 = vadd.f32 %v414, %v490
      %v492 = vpop.f32.mrb[0].mxu0
      %493 = vmatprep.mubr.bf16.mxu0 0
      %494 = vmatmul.mubr.bf16.gmra.mrb[0].mxu0 %v433
      %v495 = vpop.f32.mrb[0].mxu0
      %v496 = vadd.f32 %v414, %v495
      %v497 = vpop.f32.mrb[0].mxu0
      %v498 = vpop.f32.mrb[0].mxu0
      %v499 = vadd.f32 %v414, %v498
      %v500 = vpop.f32.mrb[0].mxu0
      %501 = vmatprep.mubr.bf16.mxu0 0
      %502 = vmatmul.mubr.bf16.gmra.mrb[0].mxu0 %v436
      %v503 = vpop.f32.mrb[0].mxu0
      %v504 = vadd.f32 %v414, %v503
      %v505 = vpop.f32.mrb[0].mxu0
      %v506 = vpop.f32.mrb[0].mxu0
      %v507 = vadd.f32 %v414, %v506
      %v508 = vpop.f32.mrb[0].mxu0
      %509 = vmatprep.mubr.bf16.mxu0 0
      %510 = vmatmul.mubr.bf16.gmra.mrb[0].mxu0 %v439
      %v511 = vpop.f32.mrb[0].mxu0
      %v512 = vadd.f32 %v414, %v511
      %v513 = vpop.f32.mrb[0].mxu0
      %v514 = vpop.f32.mrb[0].mxu0
      %v515 = vadd.f32 %v414, %v514
      %v516 = vpop.f32.mrb[0].mxu0
      %517 = vmatprep.mubr.bf16.mxu0 0
      %518 = vmatmul.mubr.bf16.gmra.mrb[0].mxu0 %v442
      %v519 = vpop.f32.mrb[0].mxu0
      %v520 = vadd.f32 %v414, %v519
      %v521 = vpop.f32.mrb[0].mxu0
      %v522 = vpop.f32.mrb[0].mxu0
      %v523 = vadd.f32 %v414, %v522
      %v524 = vpop.f32.mrb[0].mxu0
      %525 = vmatprep.mubr.bf16.mxu0 0
      %526 = vmatmul.mubr.bf16.gmra.mrb[0].mxu0 %v445
      %v527 = vpop.f32.mrb[0].mxu0
      %v528 = vadd.f32 %v414, %v527
      %v529 = vpop.f32.mrb[0].mxu0
      %v530 = vpop.f32.mrb[0].mxu0
      %v531 = vadd.f32 %v414, %v530
      %v532 = vpop.f32.mrb[0].mxu0
      %533 = vmatprep.mubr.bf16.mxu0 0
      %534 = vmatmul.mubr.bf16.gmra.mrb[0].mxu0 %v448
      %v535 = vpop.f32.mrb[0].mxu0
      %v536 = vadd.f32 %v414, %v535
      %v537 = vpop.f32.mrb[0].mxu0
      %v538 = vpop.f32.mrb[0].mxu0
      %v539 = vadd.f32 %v414, %v538
      %v540 = vpop.f32.mrb[0].mxu0
      %541 = vmatprep.mubr.bf16.mxu0 0
      %542 = vmatmul.mubr.bf16.gmra.mrb[0].mxu0 %v451
      %v543 = vpop.f32.mrb[0].mxu0
      %v544 = vadd.f32 %v414, %v543
      %v545 = vpop.f32.mrb[0].mxu0
      %v546 = vpop.f32.mrb[0].mxu0
      %v547 = vadd.f32 %v414, %v546
      %v548 = vpop.f32.mrb[0].mxu0
      %549 = vdwg.mxu0
      %v550 = vmax.f32 %v488, 0.0
      %v551 = vmax.f32 %v491, 0.0
      %v552 = vmax.f32 %v496, 0.0
      %v553 = vmax.f32 %v499, 0.0
      %v554 = vmax.f32 %v504, 0.0
      %v555 = vmax.f32 %v507, 0.0
      %v556 = vmax.f32 %v512, 0.0
      %v557 = vmax.f32 %v515, 0.0
      %v558 = vmax.f32 %v520, 0.0
      %v559 = vmax.f32 %v523, 0.0
      %v560 = vmax.f32 %v528, 0.0
      %v561 = vmax.f32 %v531, 0.0
      %v562 = vmax.f32 %v536, 0.0
      %v563 = vmax.f32 %v539, 0.0
      %v564 = vmax.f32 %v544, 0.0
      %v565 = vmax.f32 %v547, 0.0
      %v566 = vpack.c.bf16 %v551, %v550
      %v567 = vpack.c.bf16 %v553, %v552
      %v568 = vpack.c.bf16 %v555, %v554
      %v569 = vpack.c.bf16 %v557, %v556
      %v570 = vpack.c.bf16 %v559, %v558
      %v571 = vpack.c.bf16 %v561, %v560
      %v572 = vpack.c.bf16 %v563, %v562
      %v573 = vpack.c.bf16 %v565, %v564
      %v574 = vld [vmem:[%s5] sm:$0xf]
      %v575 = vld [vmem:[%s5 + $0x4] sm:$0xf]
      %v576 = vld [vmem:[%s5 + $0x8] sm:$0xf]
      %v577 = vld [vmem:[%s5 + $0xc] sm:$0xf]
      %v578 = vld [vmem:[%s5 + $0x10] sm:$0xf]
      %v579 = vld [vmem:[%s5 + $0x14] sm:$0xf]
      %v580 = vld [vmem:[%s5 + $0x18] sm:$0xf]
      %v581 = vld [vmem:[%s5 + $0x1c] sm:$0xf]
      %v582 = vld [vmem:[%s6] sm:$0x1]
      %v584 = vlaneseq
      %v585 = vshrl.u32 %v584, 7
      %v586 = vsub.s32 0, %v585
      %v587 = vrot.slane %v582, %v586
      %v597 = vunpack.c.l.b16 %v574
      %v598 = vunpack.c.l.b16 %v575
      %v599 = vunpack.c.l.b16 %v576
      %v600 = vunpack.c.l.b16 %v577
      %v601 = vunpack.c.l.b16 %v578
      %v602 = vunpack.c.l.b16 %v579
      %v603 = vunpack.c.l.b16 %v580
      %v604 = vunpack.c.l.b16 %v581
      %v605 = vpack.c.b16 %v598, %v597
      %v606 = vpack.c.b16 %v600, %v599
      %v607 = vpack.c.b16 %v602, %v601
      %v608 = vpack.c.b16 %v604, %v603
      %vm613 = vcmask 523264
      %v615 = vsel %vm613, %v566, 0
      %v618 = vsel %vm613, %v567, 0
      %v621 = vsel %vm613, %v568, 0
      %v624 = vsel %vm613, %v569, 0
      %v627 = vsel %vm613, %v570, 0
      %v630 = vsel %vm613, %v571, 0
      %v633 = vsel %vm613, %v572, 0
      %v636 = vsel %vm613, %v573, 0
      %638 = vmatprep.subr.bf16.mxu0 0
      %639 = vmatpush1.bf16.msra.mxu0 %v605
      %640 = vmatprep.subr.bf16.mxu0 0
      %641 = vmatpush1.bf16.msra.mxu0 %v606
      %642 = vmatprep.subr.bf16.mxu0 0
      %643 = vmatpush1.bf16.msra.mxu0 %v607
      %644 = vmatprep.subr.bf16.mxu0 0
      %645 = vmatpush1.bf16.msra.mxu0 %v608
      %646 = vmatprep.subr.bf16.mxu0 0
      %647 = vmatpush1.bf16.msra.mxu0 0
      %648 = vmatprep.subr.bf16.mxu0 0
      %649 = vmatpush1.bf16.msra.mxu0 0
      %650 = vmatprep.subr.bf16.mxu0 0
      %651 = vmatpush1.bf16.msra.mxu0 0
      %652 = vmatprep.subr.bf16.mxu0 0
      %653 = vmatpush1.bf16.msra.mxu0 0
      %654 = vmatprep.subr.bf16.mxu0 0
      %655 = vmatpush1.bf16.msra.mxu0 0
      %656 = vmatprep.subr.bf16.mxu0 0
      %657 = vmatpush1.bf16.msra.mxu0 0
      %658 = vmatprep.subr.bf16.mxu0 0
      %659 = vmatpush1.bf16.msra.mxu0 0
      %660 = vmatprep.subr.bf16.mxu0 0
      %661 = vmatpush1.bf16.msra.mxu0 0
      %662 = vmatprep.subr.bf16.mxu0 0
      %663 = vmatpush1.bf16.msra.mxu0 0
      %664 = vmatprep.subr.bf16.mxu0 0
      %665 = vmatpush1.bf16.msra.mxu0 0
      %666 = vmatprep.subr.bf16.mxu0 0
      %667 = vmatpush1.bf16.msra.mxu0 0
      %668 = vmatprep.subr.bf16.mxu0 0
      %669 = vmatpush1.bf16.msra.mxu0 0
      %670 = vmatprep.mubr.bf16.mxu0 0
      %671 = vmatmul.mubr.bf16.gmra.mrb[0].mxu0 %v615
      %v672 = vpop.f32.mrb[0].mxu0
      %v673 = vadd.f32 %v587, %v672
      %v674 = vpop.f32.mrb[0].mxu0
      %v675 = vpop.f32.mrb[0].mxu0
      %v676 = vadd.f32 %v587, %v675
      %v677 = vpop.f32.mrb[0].mxu0
      %678 = vmatprep.mubr.bf16.mxu0 0
      %679 = vmatmul.mubr.bf16.gmra.mrb[0].mxu0 %v618
      %v680 = vpop.f32.mrb[0].mxu0
      %v681 = vadd.f32 %v587, %v680
      %v682 = vpop.f32.mrb[0].mxu0
      %v683 = vpop.f32.mrb[0].mxu0
      %v684 = vadd.f32 %v587, %v683
      %v685 = vpop.f32.mrb[0].mxu0
      %686 = vmatprep.mubr.bf16.mxu0 0
      %687 = vmatmul.mubr.bf16.gmra.mrb[0].mxu0 %v621
      %v688 = vpop.f32.mrb[0].mxu0
      %v689 = vadd.f32 %v587, %v688
      %v690 = vpop.f32.mrb[0].mxu0
      %v691 = vpop.f32.mrb[0].mxu0
      %v692 = vadd.f32 %v587, %v691
      %v693 = vpop.f32.mrb[0].mxu0
      %694 = vmatprep.mubr.bf16.mxu0 0
      %695 = vmatmul.mubr.bf16.gmra.mrb[0].mxu0 %v624
      %v696 = vpop.f32.mrb[0].mxu0
      %v697 = vadd.f32 %v587, %v696
      %v698 = vpop.f32.mrb[0].mxu0
      %v699 = vpop.f32.mrb[0].mxu0
      %v700 = vadd.f32 %v587, %v699
      %v701 = vpop.f32.mrb[0].mxu0
      %702 = vmatprep.mubr.bf16.mxu0 0
      %703 = vmatmul.mubr.bf16.gmra.mrb[0].mxu0 %v627
      %v704 = vpop.f32.mrb[0].mxu0
      %v705 = vadd.f32 %v587, %v704
      %v706 = vpop.f32.mrb[0].mxu0
      %v707 = vpop.f32.mrb[0].mxu0
      %v708 = vadd.f32 %v587, %v707
      %v709 = vpop.f32.mrb[0].mxu0
      %710 = vmatprep.mubr.bf16.mxu0 0
      %711 = vmatmul.mubr.bf16.gmra.mrb[0].mxu0 %v630
      %v712 = vpop.f32.mrb[0].mxu0
      %v713 = vadd.f32 %v587, %v712
      %v714 = vpop.f32.mrb[0].mxu0
      %v715 = vpop.f32.mrb[0].mxu0
      %v716 = vadd.f32 %v587, %v715
      %v717 = vpop.f32.mrb[0].mxu0
      %718 = vmatprep.mubr.bf16.mxu0 0
      %719 = vmatmul.mubr.bf16.gmra.mrb[0].mxu0 %v633
      %v720 = vpop.f32.mrb[0].mxu0
      %v721 = vadd.f32 %v587, %v720
      %v722 = vpop.f32.mrb[0].mxu0
      %v723 = vpop.f32.mrb[0].mxu0
      %v724 = vadd.f32 %v587, %v723
      %v725 = vpop.f32.mrb[0].mxu0
      %726 = vmatprep.mubr.bf16.mxu0 0
      %727 = vmatmul.mubr.bf16.gmra.mrb[0].mxu0 %v636
      %v728 = vpop.f32.mrb[0].mxu0
      %v729 = vadd.f32 %v587, %v728
      %v730 = vpop.f32.mrb[0].mxu0
      %v731 = vpop.f32.mrb[0].mxu0
      %v732 = vadd.f32 %v587, %v731
      %v733 = vpop.f32.mrb[0].mxu0
      %734 = vdwg.mxu0
      %v735 = vadd.f32 %v381, %v673
      %v736 = vadd.f32 %v382, %v676
      %v737 = vadd.f32 %v383, %v681
      %v738 = vadd.f32 %v384, %v684
      %v739 = vadd.f32 %v385, %v689
      %v740 = vadd.f32 %v386, %v692
      %v741 = vadd.f32 %v387, %v697
      %v742 = vadd.f32 %v388, %v700
      %v743 = vadd.f32 %v389, %v705
      %v744 = vadd.f32 %v390, %v708
      %v745 = vadd.f32 %v391, %v713
      %v746 = vadd.f32 %v392, %v716
      %v747 = vadd.f32 %v393, %v721
      %v748 = vadd.f32 %v394, %v724
      %v749 = vadd.f32 %v395, %v729
      %v750 = vadd.f32 %v396, %v732
      %v751 = vld [vmem:[%s366] sm:$0xff]
      %v752 = vld [vmem:[%s366 + $0x8] sm:$0xff]
      %v753 = vld [vmem:[%s366 + $0x10] sm:$0xff]
      %v754 = vld [vmem:[%s366 + $0x18] sm:$0xff]
      %v755 = vld [vmem:[%s366 + $0x20] sm:$0xff]
      %v756 = vld [vmem:[%s366 + $0x28] sm:$0xff]
      %v757 = vld [vmem:[%s366 + $0x30] sm:$0xff]
      %v758 = vld [vmem:[%s366 + $0x38] sm:$0xff]
      %v759 = vld [vmem:[%s366 + $0x40] sm:$0xff]
      %v760 = vld [vmem:[%s366 + $0x48] sm:$0xff]
      %v761 = vld [vmem:[%s366 + $0x50] sm:$0xff]
      %v762 = vld [vmem:[%s366 + $0x58] sm:$0xff]
      %v763 = vld [vmem:[%s366 + $0x60] sm:$0xff]
      %v764 = vld [vmem:[%s366 + $0x68] sm:$0xff]
      %v765 = vld [vmem:[%s366 + $0x70] sm:$0xff]
      %v766 = vld [vmem:[%s366 + $0x78] sm:$0xff]
      %v767 = vld [vmem:[%s372] sm:$0xff]
      %v768 = vld [vmem:[%s372 + $0x8] sm:$0xff]
      %v769 = vld [vmem:[%s372 + $0x10] sm:$0xff]
      %v770 = vld [vmem:[%s372 + $0x18] sm:$0xff]
      %v771 = vld [vmem:[%s372 + $0x20] sm:$0xff]
      %v772 = vld [vmem:[%s372 + $0x28] sm:$0xff]
      %v773 = vld [vmem:[%s372 + $0x30] sm:$0xff]
      %v774 = vld [vmem:[%s372 + $0x38] sm:$0xff]
      %v775 = vld [vmem:[%s372 + $0x40] sm:$0xff]
      %v776 = vld [vmem:[%s372 + $0x48] sm:$0xff]
      %v777 = vld [vmem:[%s372 + $0x50] sm:$0xff]
      %v778 = vld [vmem:[%s372 + $0x58] sm:$0xff]
      %v779 = vld [vmem:[%s372 + $0x60] sm:$0xff]
      %v780 = vld [vmem:[%s372 + $0x68] sm:$0xff]
      %v781 = vld [vmem:[%s372 + $0x70] sm:$0xff]
      %v782 = vld [vmem:[%s372 + $0x78] sm:$0xff]
      %v783 = vsel %vm428, %v735, 0.0
      %784 = vadd.xlane.f32.xlu0 %v783
      %v785 = vpop.xlane.xlu0 %784
      %v786 = vsel %vm428, %v736, 0.0
      %787 = vadd.xlane.f32.xlu0 %v786
      %v788 = vpop.xlane.xlu0 %787
      %v789 = vsel %vm428, %v737, 0.0
      %790 = vadd.xlane.f32.xlu0 %v789
      %v791 = vpop.xlane.xlu0 %790
      %v792 = vsel %vm428, %v738, 0.0
      %793 = vadd.xlane.f32.xlu0 %v792
      %v794 = vpop.xlane.xlu0 %793
      %v795 = vsel %vm428, %v739, 0.0
      %796 = vadd.xlane.f32.xlu0 %v795
      %v797 = vpop.xlane.xlu0 %796
      %v798 = vsel %vm428, %v740, 0.0
      %799 = vadd.xlane.f32.xlu0 %v798
      %v800 = vpop.xlane.xlu0 %799
      %v801 = vsel %vm428, %v741, 0.0
      %802 = vadd.xlane.f32.xlu0 %v801
      %v803 = vpop.xlane.xlu0 %802
      %v804 = vsel %vm428, %v742, 0.0
      %805 = vadd.xlane.f32.xlu0 %v804
      %v806 = vpop.xlane.xlu0 %805
      %v807 = vsel %vm428, %v743, 0.0
      %808 = vadd.xlane.f32.xlu0 %v807
      %v809 = vpop.xlane.xlu0 %808
      %v810 = vsel %vm428, %v744, 0.0
      %811 = vadd.xlane.f32.xlu0 %v810
      %v812 = vpop.xlane.xlu0 %811
      %v813 = vsel %vm428, %v745, 0.0
      %814 = vadd.xlane.f32.xlu0 %v813
      %v815 = vpop.xlane.xlu0 %814
      %v816 = vsel %vm428, %v746, 0.0
      %817 = vadd.xlane.f32.xlu0 %v816
      %v818 = vpop.xlane.xlu0 %817
      %v819 = vsel %vm428, %v747, 0.0
      %820 = vadd.xlane.f32.xlu0 %v819
      %v821 = vpop.xlane.xlu0 %820
      %v822 = vsel %vm428, %v748, 0.0
      %823 = vadd.xlane.f32.xlu0 %v822
      %v824 = vpop.xlane.xlu0 %823
      %v825 = vsel %vm428, %v749, 0.0
      %826 = vadd.xlane.f32.xlu0 %v825
      %v827 = vpop.xlane.xlu0 %826
      %v828 = vsel %vm428, %v750, 0.0
      %829 = vadd.xlane.f32.xlu0 %v828
      %v830 = vpop.xlane.xlu0 %829
      %vm831 = vcmask 130048
      %v832 = vsel %vm831, %v751, 0.0
      %833 = vadd.xlane.f32.xlu0 %v832
      %v834 = vpop.xlane.xlu0 %833
      %v835 = vsel %vm831, %v752, 0.0
      %836 = vadd.xlane.f32.xlu0 %v835
      %v837 = vpop.xlane.xlu0 %836
      %v838 = vsel %vm831, %v753, 0.0
      %839 = vadd.xlane.f32.xlu0 %v838
      %v840 = vpop.xlane.xlu0 %839
      %v841 = vsel %vm831, %v754, 0.0
      %842 = vadd.xlane.f32.xlu0 %v841
      %v843 = vpop.xlane.xlu0 %842
      %v844 = vsel %vm831, %v755, 0.0
      %845 = vadd.xlane.f32.xlu0 %v844
      %v846 = vpop.xlane.xlu0 %845
      %v847 = vsel %vm831, %v756, 0.0
      %848 = vadd.xlane.f32.xlu0 %v847
      %v849 = vpop.xlane.xlu0 %848
      %v850 = vsel %vm831, %v757, 0.0
      %851 = vadd.xlane.f32.xlu0 %v850
      %v852 = vpop.xlane.xlu0 %851
      %v853 = vsel %vm831, %v758, 0.0
      %854 = vadd.xlane.f32.xlu0 %v853
      %v855 = vpop.xlane.xlu0 %854
      %v856 = vsel %vm831, %v759, 0.0
      %857 = vadd.xlane.f32.xlu0 %v856
      %v858 = vpop.xlane.xlu0 %857
      %v859 = vsel %vm831, %v760, 0.0
      %860 = vadd.xlane.f32.xlu0 %v859
      %v861 = vpop.xlane.xlu0 %860
      %v862 = vsel %vm831, %v761, 0.0
      %863 = vadd.xlane.f32.xlu0 %v862
      %v864 = vpop.xlane.xlu0 %863
      %v865 = vsel %vm831, %v762, 0.0
      %866 = vadd.xlane.f32.xlu0 %v865
      %v867 = vpop.xlane.xlu0 %866
      %v868 = vsel %vm831, %v763, 0.0
      %869 = vadd.xlane.f32.xlu0 %v868
      %v870 = vpop.xlane.xlu0 %869
      %v871 = vsel %vm831, %v764, 0.0
      %872 = vadd.xlane.f32.xlu0 %v871
      %v873 = vpop.xlane.xlu0 %872
      %v874 = vsel %vm831, %v765, 0.0
      %875 = vadd.xlane.f32.xlu0 %v874
      %v876 = vpop.xlane.xlu0 %875
      %v877 = vsel %vm831, %v766, 0.0
      %878 = vadd.xlane.f32.xlu0 %v877
      %v879 = vpop.xlane.xlu0 %878
      %v880 = vadd.f32 %v785, %v834
      %v881 = vadd.f32 %v788, %v837
      %v882 = vadd.f32 %v791, %v840
      %v883 = vadd.f32 %v794, %v843
      %v884 = vadd.f32 %v797, %v846
      %v885 = vadd.f32 %v800, %v849
      %v886 = vadd.f32 %v803, %v852
      %v887 = vadd.f32 %v806, %v855
      %v888 = vadd.f32 %v809, %v858
      %v889 = vadd.f32 %v812, %v861
      %v890 = vadd.f32 %v815, %v864
      %v891 = vadd.f32 %v818, %v867
      %v892 = vadd.f32 %v821, %v870
      %v893 = vadd.f32 %v824, %v873
      %v894 = vadd.f32 %v827, %v876
      %v895 = vadd.f32 %v830, %v879
      %v896 = vsel %vm831, %v767, 0.0
      %897 = vadd.xlane.f32.xlu0 %v896
      %v898 = vpop.xlane.xlu0 %897
      %v899 = vsel %vm831, %v768, 0.0
      %900 = vadd.xlane.f32.xlu0 %v899
      %v901 = vpop.xlane.xlu0 %900
      %v902 = vsel %vm831, %v769, 0.0
      %903 = vadd.xlane.f32.xlu0 %v902
      %v904 = vpop.xlane.xlu0 %903
      %v905 = vsel %vm831, %v770, 0.0
      %906 = vadd.xlane.f32.xlu0 %v905
      %v907 = vpop.xlane.xlu0 %906
      %v908 = vsel %vm831, %v771, 0.0
      %909 = vadd.xlane.f32.xlu0 %v908
      %v910 = vpop.xlane.xlu0 %909
      %v911 = vsel %vm831, %v772, 0.0
      %912 = vadd.xlane.f32.xlu0 %v911
      %v913 = vpop.xlane.xlu0 %912
      %v914 = vsel %vm831, %v773, 0.0
      %915 = vadd.xlane.f32.xlu0 %v914
      %v916 = vpop.xlane.xlu0 %915
      %v917 = vsel %vm831, %v774, 0.0
      %918 = vadd.xlane.f32.xlu0 %v917
      %v919 = vpop.xlane.xlu0 %918
      %v920 = vsel %vm831, %v775, 0.0
      %921 = vadd.xlane.f32.xlu0 %v920
      %v922 = vpop.xlane.xlu0 %921
      %v923 = vsel %vm831, %v776, 0.0
      %924 = vadd.xlane.f32.xlu0 %v923
      %v925 = vpop.xlane.xlu0 %924
      %v926 = vsel %vm831, %v777, 0.0
      %927 = vadd.xlane.f32.xlu0 %v926
      %v928 = vpop.xlane.xlu0 %927
      %v929 = vsel %vm831, %v778, 0.0
      %930 = vadd.xlane.f32.xlu0 %v929
      %v931 = vpop.xlane.xlu0 %930
      %v932 = vsel %vm831, %v779, 0.0
      %933 = vadd.xlane.f32.xlu0 %v932
      %v934 = vpop.xlane.xlu0 %933
      %v935 = vsel %vm831, %v780, 0.0
      %936 = vadd.xlane.f32.xlu0 %v935
      %v937 = vpop.xlane.xlu0 %936
      %v938 = vsel %vm831, %v781, 0.0
      %939 = vadd.xlane.f32.xlu0 %v938
      %v940 = vpop.xlane.xlu0 %939
      %v941 = vsel %vm831, %v782, 0.0
      %942 = vadd.xlane.f32.xlu0 %v941
      %v943 = vpop.xlane.xlu0 %942
      %v944 = vadd.f32 %v880, %v898
      %v945 = vadd.f32 %v881, %v901
      %v946 = vadd.f32 %v882, %v904
      %v947 = vadd.f32 %v883, %v907
      %v948 = vadd.f32 %v884, %v910
      %v949 = vadd.f32 %v885, %v913
      %v950 = vadd.f32 %v886, %v916
      %v951 = vadd.f32 %v887, %v919
      %v952 = vadd.f32 %v888, %v922
      %v953 = vadd.f32 %v889, %v925
      %v954 = vadd.f32 %v890, %v928
      %v955 = vadd.f32 %v891, %v931
      %v956 = vadd.f32 %v892, %v934
      %v957 = vadd.f32 %v893, %v937
      %v958 = vadd.f32 %v894, %v940
      %v959 = vadd.f32 %v895, %v943
      %v960 = vmul.f32 %v944, 0.015625
      %v961 = vmul.f32 %v945, 0.015625
      %v962 = vmul.f32 %v946, 0.015625
      %v963 = vmul.f32 %v947, 0.015625
      %v964 = vmul.f32 %v948, 0.015625
      %v965 = vmul.f32 %v949, 0.015625
      %v966 = vmul.f32 %v950, 0.015625
      %v967 = vmul.f32 %v951, 0.015625
      %v968 = vmul.f32 %v952, 0.015625
      %v969 = vmul.f32 %v953, 0.015625
      %v970 = vmul.f32 %v954, 0.015625
      %v971 = vmul.f32 %v955, 0.015625
      %v972 = vmul.f32 %v956, 0.015625
      %v973 = vmul.f32 %v957, 0.015625
      %v974 = vmul.f32 %v958, 0.015625
      %v975 = vmul.f32 %v959, 0.015625
      %v976 = vsub.f32 %v735, %v960
      %v977 = vsub.f32 %v736, %v961
      %v978 = vsub.f32 %v737, %v962
      %v979 = vsub.f32 %v738, %v963
      %v980 = vsub.f32 %v739, %v964
      %v981 = vsub.f32 %v740, %v965
      %v982 = vsub.f32 %v741, %v966
      %v983 = vsub.f32 %v742, %v967
      %v984 = vsub.f32 %v743, %v968
      %v985 = vsub.f32 %v744, %v969
      %v986 = vsub.f32 %v745, %v970
      %v987 = vsub.f32 %v746, %v971
      %v988 = vsub.f32 %v747, %v972
      %v989 = vsub.f32 %v748, %v973
      %v990 = vsub.f32 %v749, %v974
      %v991 = vsub.f32 %v750, %v975
      %v992 = vsub.f32 %v751, %v960
      %v993 = vsub.f32 %v752, %v961
      %v994 = vsub.f32 %v753, %v962
      %v995 = vsub.f32 %v754, %v963
      %v996 = vsub.f32 %v755, %v964
      %v997 = vsub.f32 %v756, %v965
      %v998 = vsub.f32 %v757, %v966
      %v999 = vsub.f32 %v758, %v967
      %v1000 = vsub.f32 %v759, %v968
      %v1001 = vsub.f32 %v760, %v969
      %v1002 = vsub.f32 %v761, %v970
      %v1003 = vsub.f32 %v762, %v971
      %v1004 = vsub.f32 %v763, %v972
      %v1005 = vsub.f32 %v764, %v973
      %v1006 = vsub.f32 %v765, %v974
      %v1007 = vsub.f32 %v766, %v975
      %v1008 = vsub.f32 %v767, %v960
      %v1009 = vsub.f32 %v768, %v961
      %v1010 = vsub.f32 %v769, %v962
      %v1011 = vsub.f32 %v770, %v963
      %v1012 = vsub.f32 %v771, %v964
      %v1013 = vsub.f32 %v772, %v965
      %v1014 = vsub.f32 %v773, %v966
      %v1015 = vsub.f32 %v774, %v967
      %v1016 = vsub.f32 %v775, %v968
      %v1017 = vsub.f32 %v776, %v969
      %v1018 = vsub.f32 %v777, %v970
      %v1019 = vsub.f32 %v778, %v971
      %v1020 = vsub.f32 %v779, %v972
      %v1021 = vsub.f32 %v780, %v973
      %v1022 = vsub.f32 %v781, %v974
      %v1023 = vsub.f32 %v782, %v975
      %v1024 = vmul.f32 %v976, %v976
      %v1025 = vmul.f32 %v977, %v977
      %v1026 = vmul.f32 %v978, %v978
      %v1027 = vmul.f32 %v979, %v979
      %v1028 = vmul.f32 %v980, %v980
      %v1029 = vmul.f32 %v981, %v981
      %v1030 = vmul.f32 %v982, %v982
      %v1031 = vmul.f32 %v983, %v983
      %v1032 = vmul.f32 %v984, %v984
      %v1033 = vmul.f32 %v985, %v985
      %v1034 = vmul.f32 %v986, %v986
      %v1035 = vmul.f32 %v987, %v987
      %v1036 = vmul.f32 %v988, %v988
      %v1037 = vmul.f32 %v989, %v989
      %v1038 = vmul.f32 %v990, %v990
      %v1039 = vmul.f32 %v991, %v991
      %v1040 = vsel %vm428, %v1024, 0.0
      %1041 = vadd.xlane.f32.xlu0 %v1040
      %v1042 = vpop.xlane.xlu0 %1041
      %v1043 = vsel %vm428, %v1025, 0.0
      %1044 = vadd.xlane.f32.xlu0 %v1043
      %v1045 = vpop.xlane.xlu0 %1044
      %v1046 = vsel %vm428, %v1026, 0.0
      %1047 = vadd.xlane.f32.xlu0 %v1046
      %v1048 = vpop.xlane.xlu0 %1047
      %v1049 = vsel %vm428, %v1027, 0.0
      %1050 = vadd.xlane.f32.xlu0 %v1049
      %v1051 = vpop.xlane.xlu0 %1050
      %v1052 = vsel %vm428, %v1028, 0.0
      %1053 = vadd.xlane.f32.xlu0 %v1052
      %v1054 = vpop.xlane.xlu0 %1053
      %v1055 = vsel %vm428, %v1029, 0.0
      %1056 = vadd.xlane.f32.xlu0 %v1055
      %v1057 = vpop.xlane.xlu0 %1056
      %v1058 = vsel %vm428, %v1030, 0.0
      %1059 = vadd.xlane.f32.xlu0 %v1058
      %v1060 = vpop.xlane.xlu0 %1059
      %v1061 = vsel %vm428, %v1031, 0.0
      %1062 = vadd.xlane.f32.xlu0 %v1061
      %v1063 = vpop.xlane.xlu0 %1062
      %v1064 = vsel %vm428, %v1032, 0.0
      %1065 = vadd.xlane.f32.xlu0 %v1064
      %v1066 = vpop.xlane.xlu0 %1065
      %v1067 = vsel %vm428, %v1033, 0.0
      %1068 = vadd.xlane.f32.xlu0 %v1067
      %v1069 = vpop.xlane.xlu0 %1068
      %v1070 = vsel %vm428, %v1034, 0.0
      %1071 = vadd.xlane.f32.xlu0 %v1070
      %v1072 = vpop.xlane.xlu0 %1071
      %v1073 = vsel %vm428, %v1035, 0.0
      %1074 = vadd.xlane.f32.xlu0 %v1073
      %v1075 = vpop.xlane.xlu0 %1074
      %v1076 = vsel %vm428, %v1036, 0.0
      %1077 = vadd.xlane.f32.xlu0 %v1076
      %v1078 = vpop.xlane.xlu0 %1077
      %v1079 = vsel %vm428, %v1037, 0.0
      %1080 = vadd.xlane.f32.xlu0 %v1079
      %v1081 = vpop.xlane.xlu0 %1080
      %v1082 = vsel %vm428, %v1038, 0.0
      %1083 = vadd.xlane.f32.xlu0 %v1082
      %v1084 = vpop.xlane.xlu0 %1083
      %v1085 = vsel %vm428, %v1039, 0.0
      %1086 = vadd.xlane.f32.xlu0 %v1085
      %v1087 = vpop.xlane.xlu0 %1086
      %v1088 = vmul.f32 %v992, %v992
      %v1089 = vmul.f32 %v993, %v993
      %v1090 = vmul.f32 %v994, %v994
      %v1091 = vmul.f32 %v995, %v995
      %v1092 = vmul.f32 %v996, %v996
      %v1093 = vmul.f32 %v997, %v997
      %v1094 = vmul.f32 %v998, %v998
      %v1095 = vmul.f32 %v999, %v999
      %v1096 = vmul.f32 %v1000, %v1000
      %v1097 = vmul.f32 %v1001, %v1001
      %v1098 = vmul.f32 %v1002, %v1002
      %v1099 = vmul.f32 %v1003, %v1003
      %v1100 = vmul.f32 %v1004, %v1004
      %v1101 = vmul.f32 %v1005, %v1005
      %v1102 = vmul.f32 %v1006, %v1006
      %v1103 = vmul.f32 %v1007, %v1007
      %v1104 = vsel %vm831, %v1088, 0.0
      %1105 = vadd.xlane.f32.xlu0 %v1104
      %v1106 = vpop.xlane.xlu0 %1105
      %v1107 = vsel %vm831, %v1089, 0.0
      %1108 = vadd.xlane.f32.xlu0 %v1107
      %v1109 = vpop.xlane.xlu0 %1108
      %v1110 = vsel %vm831, %v1090, 0.0
      %1111 = vadd.xlane.f32.xlu0 %v1110
      %v1112 = vpop.xlane.xlu0 %1111
      %v1113 = vsel %vm831, %v1091, 0.0
      %1114 = vadd.xlane.f32.xlu0 %v1113
      %v1115 = vpop.xlane.xlu0 %1114
      %v1116 = vsel %vm831, %v1092, 0.0
      %1117 = vadd.xlane.f32.xlu0 %v1116
      %v1118 = vpop.xlane.xlu0 %1117
      %v1119 = vsel %vm831, %v1093, 0.0
      %1120 = vadd.xlane.f32.xlu0 %v1119
      %v1121 = vpop.xlane.xlu0 %1120
      %v1122 = vsel %vm831, %v1094, 0.0
      %1123 = vadd.xlane.f32.xlu0 %v1122
      %v1124 = vpop.xlane.xlu0 %1123
      %v1125 = vsel %vm831, %v1095, 0.0
      %1126 = vadd.xlane.f32.xlu0 %v1125
      %v1127 = vpop.xlane.xlu0 %1126
      %v1128 = vsel %vm831, %v1096, 0.0
      %1129 = vadd.xlane.f32.xlu0 %v1128
      %v1130 = vpop.xlane.xlu0 %1129
      %v1131 = vsel %vm831, %v1097, 0.0
      %1132 = vadd.xlane.f32.xlu0 %v1131
      %v1133 = vpop.xlane.xlu0 %1132
      %v1134 = vsel %vm831, %v1098, 0.0
      %1135 = vadd.xlane.f32.xlu0 %v1134
      %v1136 = vpop.xlane.xlu0 %1135
      %v1137 = vsel %vm831, %v1099, 0.0
      %1138 = vadd.xlane.f32.xlu0 %v1137
      %v1139 = vpop.xlane.xlu0 %1138
      %v1140 = vsel %vm831, %v1100, 0.0
      %1141 = vadd.xlane.f32.xlu0 %v1140
      %v1142 = vpop.xlane.xlu0 %1141
      %v1143 = vsel %vm831, %v1101, 0.0
      %1144 = vadd.xlane.f32.xlu0 %v1143
      %v1145 = vpop.xlane.xlu0 %1144
      %v1146 = vsel %vm831, %v1102, 0.0
      %1147 = vadd.xlane.f32.xlu0 %v1146
      %v1148 = vpop.xlane.xlu0 %1147
      %v1149 = vsel %vm831, %v1103, 0.0
      %1150 = vadd.xlane.f32.xlu0 %v1149
      %v1151 = vpop.xlane.xlu0 %1150
      %v1152 = vadd.f32 %v1042, %v1106
      %v1153 = vadd.f32 %v1045, %v1109
      %v1154 = vadd.f32 %v1048, %v1112
      %v1155 = vadd.f32 %v1051, %v1115
      %v1156 = vadd.f32 %v1054, %v1118
      %v1157 = vadd.f32 %v1057, %v1121
      %v1158 = vadd.f32 %v1060, %v1124
      %v1159 = vadd.f32 %v1063, %v1127
      %v1160 = vadd.f32 %v1066, %v1130
      %v1161 = vadd.f32 %v1069, %v1133
      %v1162 = vadd.f32 %v1072, %v1136
      %v1163 = vadd.f32 %v1075, %v1139
      %v1164 = vadd.f32 %v1078, %v1142
      %v1165 = vadd.f32 %v1081, %v1145
      %v1166 = vadd.f32 %v1084, %v1148
      %v1167 = vadd.f32 %v1087, %v1151
      %v1168 = vmul.f32 %v1008, %v1008
      %v1169 = vmul.f32 %v1009, %v1009
      %v1170 = vmul.f32 %v1010, %v1010
      %v1171 = vmul.f32 %v1011, %v1011
      %v1172 = vmul.f32 %v1012, %v1012
      %v1173 = vmul.f32 %v1013, %v1013
      %v1174 = vmul.f32 %v1014, %v1014
      %v1175 = vmul.f32 %v1015, %v1015
      %v1176 = vmul.f32 %v1016, %v1016
      %v1177 = vmul.f32 %v1017, %v1017
      %v1178 = vmul.f32 %v1018, %v1018
      %v1179 = vmul.f32 %v1019, %v1019
      %v1180 = vmul.f32 %v1020, %v1020
      %v1181 = vmul.f32 %v1021, %v1021
      %v1182 = vmul.f32 %v1022, %v1022
      %v1183 = vmul.f32 %v1023, %v1023
      %v1184 = vsel %vm831, %v1168, 0.0
      %1185 = vadd.xlane.f32.xlu0 %v1184
      %v1186 = vpop.xlane.xlu0 %1185
      %v1187 = vsel %vm831, %v1169, 0.0
      %1188 = vadd.xlane.f32.xlu0 %v1187
      %v1189 = vpop.xlane.xlu0 %1188
      %v1190 = vsel %vm831, %v1170, 0.0
      %1191 = vadd.xlane.f32.xlu0 %v1190
      %v1192 = vpop.xlane.xlu0 %1191
      %v1193 = vsel %vm831, %v1171, 0.0
      %1194 = vadd.xlane.f32.xlu0 %v1193
      %v1195 = vpop.xlane.xlu0 %1194
      %v1196 = vsel %vm831, %v1172, 0.0
      %1197 = vadd.xlane.f32.xlu0 %v1196
      %v1198 = vpop.xlane.xlu0 %1197
      %v1199 = vsel %vm831, %v1173, 0.0
      %1200 = vadd.xlane.f32.xlu0 %v1199
      %v1201 = vpop.xlane.xlu0 %1200
      %v1202 = vsel %vm831, %v1174, 0.0
      %1203 = vadd.xlane.f32.xlu0 %v1202
      %v1204 = vpop.xlane.xlu0 %1203
      %v1205 = vsel %vm831, %v1175, 0.0
      %1206 = vadd.xlane.f32.xlu0 %v1205
      %v1207 = vpop.xlane.xlu0 %1206
      %v1208 = vsel %vm831, %v1176, 0.0
      %1209 = vadd.xlane.f32.xlu0 %v1208
      %v1210 = vpop.xlane.xlu0 %1209
      %v1211 = vsel %vm831, %v1177, 0.0
      %1212 = vadd.xlane.f32.xlu0 %v1211
      %v1213 = vpop.xlane.xlu0 %1212
      %v1214 = vsel %vm831, %v1178, 0.0
      %1215 = vadd.xlane.f32.xlu0 %v1214
      %v1216 = vpop.xlane.xlu0 %1215
      %v1217 = vsel %vm831, %v1179, 0.0
      %1218 = vadd.xlane.f32.xlu0 %v1217
      %v1219 = vpop.xlane.xlu0 %1218
      %v1220 = vsel %vm831, %v1180, 0.0
      %1221 = vadd.xlane.f32.xlu0 %v1220
      %v1222 = vpop.xlane.xlu0 %1221
      %v1223 = vsel %vm831, %v1181, 0.0
      %1224 = vadd.xlane.f32.xlu0 %v1223
      %v1225 = vpop.xlane.xlu0 %1224
      %v1226 = vsel %vm831, %v1182, 0.0
      %1227 = vadd.xlane.f32.xlu0 %v1226
      %v1228 = vpop.xlane.xlu0 %1227
      %v1229 = vsel %vm831, %v1183, 0.0
      %1230 = vadd.xlane.f32.xlu0 %v1229
      %v1231 = vpop.xlane.xlu0 %1230
      %v1232 = vadd.f32 %v1152, %v1186
      %v1233 = vadd.f32 %v1153, %v1189
      %v1234 = vadd.f32 %v1154, %v1192
      %v1235 = vadd.f32 %v1155, %v1195
      %v1236 = vadd.f32 %v1156, %v1198
      %v1237 = vadd.f32 %v1157, %v1201
      %v1238 = vadd.f32 %v1158, %v1204
      %v1239 = vadd.f32 %v1159, %v1207
      %v1240 = vadd.f32 %v1160, %v1210
      %v1241 = vadd.f32 %v1161, %v1213
      %v1242 = vadd.f32 %v1162, %v1216
      %v1243 = vadd.f32 %v1163, %v1219
      %v1244 = vadd.f32 %v1164, %v1222
      %v1245 = vadd.f32 %v1165, %v1225
      %v1246 = vadd.f32 %v1166, %v1228
      %v1247 = vadd.f32 %v1167, %v1231
      %v1248 = vmul.f32 %v1232, 0.015625
      %v1249 = vmul.f32 %v1233, 0.015625
      %v1250 = vmul.f32 %v1234, 0.015625
      %v1251 = vmul.f32 %v1235, 0.015625
      %v1252 = vmul.f32 %v1236, 0.015625
      %v1253 = vmul.f32 %v1237, 0.015625
      %v1254 = vmul.f32 %v1238, 0.015625
      %v1255 = vmul.f32 %v1239, 0.015625
      %v1256 = vmul.f32 %v1240, 0.015625
      %v1257 = vmul.f32 %v1241, 0.015625
      %v1258 = vmul.f32 %v1242, 0.015625
      %v1259 = vmul.f32 %v1243, 0.015625
      %v1260 = vmul.f32 %v1244, 0.015625
      %v1261 = vmul.f32 %v1245, 0.015625
      %v1262 = vmul.f32 %v1246, 0.015625
      %v1263 = vmul.f32 %v1247, 0.015625
      %v1264 = vadd.f32 %v1248, 1e-05
      %v1265 = vadd.f32 %v1249, 1e-05
      %v1266 = vadd.f32 %v1250, 1e-05
      %v1267 = vadd.f32 %v1251, 1e-05
      %v1268 = vadd.f32 %v1252, 1e-05
      %v1269 = vadd.f32 %v1253, 1e-05
      %v1270 = vadd.f32 %v1254, 1e-05
      %v1271 = vadd.f32 %v1255, 1e-05
      %v1272 = vadd.f32 %v1256, 1e-05
      %v1273 = vadd.f32 %v1257, 1e-05
      %v1274 = vadd.f32 %v1258, 1e-05
      %v1275 = vadd.f32 %v1259, 1e-05
      %v1276 = vadd.f32 %v1260, 1e-05
      %v1277 = vadd.f32 %v1261, 1e-05
      %v1278 = vadd.f32 %v1262, 1e-05
      %v1279 = vadd.f32 %v1263, 1e-05
      %v1280 = vrsqrt.pop %v1264
      %v1281 = vrsqrt.pop %v1265
      %v1282 = vrsqrt.pop %v1266
      %v1283 = vrsqrt.pop %v1267
      %v1284 = vrsqrt.pop %v1268
      %v1285 = vrsqrt.pop %v1269
      %v1286 = vrsqrt.pop %v1270
      %v1287 = vrsqrt.pop %v1271
      %v1288 = vrsqrt.pop %v1272
      %v1289 = vrsqrt.pop %v1273
      %v1290 = vrsqrt.pop %v1274
      %v1291 = vrsqrt.pop %v1275
      %v1292 = vrsqrt.pop %v1276
      %v1293 = vrsqrt.pop %v1277
      %v1294 = vrsqrt.pop %v1278
      %v1295 = vrsqrt.pop %v1279
      %v1296 = vld [vmem:[%s7] sm:$0x1]
      %v1297 = vld [vmem:[%s8] sm:$0x1]
      %v1298 = vmul.f32 %v976, %v1280
      %v1299 = vmul.f32 %v977, %v1281
      %v1300 = vmul.f32 %v978, %v1282
      %v1301 = vmul.f32 %v979, %v1283
      %v1302 = vmul.f32 %v980, %v1284
      %v1303 = vmul.f32 %v981, %v1285
      %v1304 = vmul.f32 %v982, %v1286
      %v1305 = vmul.f32 %v983, %v1287
      %v1306 = vmul.f32 %v984, %v1288
      %v1307 = vmul.f32 %v985, %v1289
      %v1308 = vmul.f32 %v986, %v1290
      %v1309 = vmul.f32 %v987, %v1291
      %v1310 = vmul.f32 %v988, %v1292
      %v1311 = vmul.f32 %v989, %v1293
      %v1312 = vmul.f32 %v990, %v1294
      %v1313 = vmul.f32 %v991, %v1295
      %v1315 = vlaneseq
      %v1316 = vshrl.u32 %v1315, 7
      %v1317 = vsub.s32 0, %v1316
      %v1318 = vrot.slane %v1296, %v1317
      %v1320 = vmul.f32 %v1298, %v1318
      %v1321 = vmul.f32 %v1299, %v1318
      %v1322 = vmul.f32 %v1300, %v1318
      %v1323 = vmul.f32 %v1301, %v1318
      %v1324 = vmul.f32 %v1302, %v1318
      %v1325 = vmul.f32 %v1303, %v1318
      %v1326 = vmul.f32 %v1304, %v1318
      %v1327 = vmul.f32 %v1305, %v1318
      %v1328 = vmul.f32 %v1306, %v1318
      %v1329 = vmul.f32 %v1307, %v1318
      %v1330 = vmul.f32 %v1308, %v1318
      %v1331 = vmul.f32 %v1309, %v1318
      %v1332 = vmul.f32 %v1310, %v1318
      %v1333 = vmul.f32 %v1311, %v1318
      %v1334 = vmul.f32 %v1312, %v1318
      %v1335 = vmul.f32 %v1313, %v1318
      %v1337 = vlaneseq
      %v1338 = vshrl.u32 %v1337, 7
      %v1339 = vsub.s32 0, %v1338
      %v1340 = vrot.slane %v1297, %v1339
      %v1342 = vadd.f32 %v1320, %v1340
      %v1343 = vadd.f32 %v1321, %v1340
      %v1344 = vadd.f32 %v1322, %v1340
      %v1345 = vadd.f32 %v1323, %v1340
      %v1346 = vadd.f32 %v1324, %v1340
      %v1347 = vadd.f32 %v1325, %v1340
      %v1348 = vadd.f32 %v1326, %v1340
      %v1349 = vadd.f32 %v1327, %v1340
      %v1350 = vadd.f32 %v1328, %v1340
      %v1351 = vadd.f32 %v1329, %v1340
      %v1352 = vadd.f32 %v1330, %v1340
      %v1353 = vadd.f32 %v1331, %v1340
      %v1354 = vadd.f32 %v1332, %v1340
      %v1355 = vadd.f32 %v1333, %v1340
      %v1356 = vadd.f32 %v1334, %v1340
      %v1357 = vadd.f32 %v1335, %v1340
      %1358 = vst.msk [vmem:[%s378] sm:$0xff] %vm428, %v1342
      %1359 = vst.msk [vmem:[%s378 + $0x8] sm:$0xff] %vm428, %v1343
      %1360 = vst.msk [vmem:[%s378 + $0x10] sm:$0xff] %vm428, %v1344
      %1361 = vst.msk [vmem:[%s378 + $0x18] sm:$0xff] %vm428, %v1345
      %1362 = vst.msk [vmem:[%s378 + $0x20] sm:$0xff] %vm428, %v1346
      %1363 = vst.msk [vmem:[%s378 + $0x28] sm:$0xff] %vm428, %v1347
      %1364 = vst.msk [vmem:[%s378 + $0x30] sm:$0xff] %vm428, %v1348
      %1365 = vst.msk [vmem:[%s378 + $0x38] sm:$0xff] %vm428, %v1349
      %1366 = vst.msk [vmem:[%s378 + $0x40] sm:$0xff] %vm428, %v1350
      %1367 = vst.msk [vmem:[%s378 + $0x48] sm:$0xff] %vm428, %v1351
      %1368 = vst.msk [vmem:[%s378 + $0x50] sm:$0xff] %vm428, %v1352
      %1369 = vst.msk [vmem:[%s378 + $0x58] sm:$0xff] %vm428, %v1353
      %1370 = vst.msk [vmem:[%s378 + $0x60] sm:$0xff] %vm428, %v1354
      %1371 = vst.msk [vmem:[%s378 + $0x68] sm:$0xff] %vm428, %v1355
      %1372 = vst.msk [vmem:[%s378 + $0x70] sm:$0xff] %vm428, %v1356
      %1373 = vst.msk [vmem:[%s378 + $0x78] sm:$0xff] %vm428, %v1357
      %v1374 = vmul.f32 %v992, %v1280
      %v1375 = vmul.f32 %v993, %v1281
      %v1376 = vmul.f32 %v994, %v1282
      %v1377 = vmul.f32 %v995, %v1283
      %v1378 = vmul.f32 %v996, %v1284
      %v1379 = vmul.f32 %v997, %v1285
      %v1380 = vmul.f32 %v998, %v1286
      %v1381 = vmul.f32 %v999, %v1287
      %v1382 = vmul.f32 %v1000, %v1288
      %v1383 = vmul.f32 %v1001, %v1289
      %v1384 = vmul.f32 %v1002, %v1290
      %v1385 = vmul.f32 %v1003, %v1291
      %v1386 = vmul.f32 %v1004, %v1292
      %v1387 = vmul.f32 %v1005, %v1293
      %v1388 = vmul.f32 %v1006, %v1294
      %v1389 = vmul.f32 %v1007, %v1295
      %1390 = vrot.lane.b32.xlu0 %v1318, 96
      %v1391 = vpop.permute.xlu0 %1390
      %v1393 = vmul.f32 %v1374, %v1391
      %v1394 = vmul.f32 %v1375, %v1391
      %v1395 = vmul.f32 %v1376, %v1391
      %v1396 = vmul.f32 %v1377, %v1391
      %v1397 = vmul.f32 %v1378, %v1391
      %v1398 = vmul.f32 %v1379, %v1391
      %v1399 = vmul.f32 %v1380, %v1391
      %v1400 = vmul.f32 %v1381, %v1391
      %v1401 = vmul.f32 %v1382, %v1391
      %v1402 = vmul.f32 %v1383, %v1391
      %v1403 = vmul.f32 %v1384, %v1391
      %v1404 = vmul.f32 %v1385, %v1391
      %v1405 = vmul.f32 %v1386, %v1391
      %v1406 = vmul.f32 %v1387, %v1391
      %v1407 = vmul.f32 %v1388, %v1391
      %v1408 = vmul.f32 %v1389, %v1391
      %1409 = vrot.lane.b32.xlu0 %v1340, 96
      %v1410 = vpop.permute.xlu0 %1409
      %v1412 = vadd.f32 %v1393, %v1410
      %v1413 = vadd.f32 %v1394, %v1410
      %v1414 = vadd.f32 %v1395, %v1410
      %v1415 = vadd.f32 %v1396, %v1410
      %v1416 = vadd.f32 %v1397, %v1410
      %v1417 = vadd.f32 %v1398, %v1410
      %v1418 = vadd.f32 %v1399, %v1410
      %v1419 = vadd.f32 %v1400, %v1410
      %v1420 = vadd.f32 %v1401, %v1410
      %v1421 = vadd.f32 %v1402, %v1410
      %v1422 = vadd.f32 %v1403, %v1410
      %v1423 = vadd.f32 %v1404, %v1410
      %v1424 = vadd.f32 %v1405, %v1410
      %v1425 = vadd.f32 %v1406, %v1410
      %v1426 = vadd.f32 %v1407, %v1410
      %v1427 = vadd.f32 %v1408, %v1410
      %1444 = vrot.lane.b32.xlu0 %v1412, 32
      %v1445 = vpop.permute.xlu0 %1444
      %1446 = vrot.lane.b32.xlu0 %v1413, 32
      %v1447 = vpop.permute.xlu0 %1446
      %1448 = vrot.lane.b32.xlu0 %v1414, 32
      %v1449 = vpop.permute.xlu0 %1448
      %1450 = vrot.lane.b32.xlu0 %v1415, 32
      %v1451 = vpop.permute.xlu0 %1450
      %1452 = vrot.lane.b32.xlu0 %v1416, 32
      %v1453 = vpop.permute.xlu0 %1452
      %1454 = vrot.lane.b32.xlu0 %v1417, 32
      %v1455 = vpop.permute.xlu0 %1454
      %1456 = vrot.lane.b32.xlu0 %v1418, 32
      %v1457 = vpop.permute.xlu0 %1456
      %1458 = vrot.lane.b32.xlu0 %v1419, 32
      %v1459 = vpop.permute.xlu0 %1458
      %1460 = vrot.lane.b32.xlu0 %v1420, 32
      %v1461 = vpop.permute.xlu0 %1460
      %1462 = vrot.lane.b32.xlu0 %v1421, 32
      %v1463 = vpop.permute.xlu0 %1462
      %1464 = vrot.lane.b32.xlu0 %v1422, 32
      %v1465 = vpop.permute.xlu0 %1464
      %1466 = vrot.lane.b32.xlu0 %v1423, 32
      %v1467 = vpop.permute.xlu0 %1466
      %1468 = vrot.lane.b32.xlu0 %v1424, 32
      %v1469 = vpop.permute.xlu0 %1468
      %1470 = vrot.lane.b32.xlu0 %v1425, 32
      %v1471 = vpop.permute.xlu0 %1470
      %1472 = vrot.lane.b32.xlu0 %v1426, 32
      %v1473 = vpop.permute.xlu0 %1472
      %1474 = vrot.lane.b32.xlu0 %v1427, 32
      %v1475 = vpop.permute.xlu0 %1474
      %vm1492 = vcmask 392448
      %1493 = vst.msk [vmem:[%s378] sm:$0xff] %vm1492, %v1445
      %1494 = vst.msk [vmem:[%s378 + $0x8] sm:$0xff] %vm1492, %v1447
      %1495 = vst.msk [vmem:[%s378 + $0x10] sm:$0xff] %vm1492, %v1449
      %1496 = vst.msk [vmem:[%s378 + $0x18] sm:$0xff] %vm1492, %v1451
      %1497 = vst.msk [vmem:[%s378 + $0x20] sm:$0xff] %vm1492, %v1453
      %1498 = vst.msk [vmem:[%s378 + $0x28] sm:$0xff] %vm1492, %v1455
      %1499 = vst.msk [vmem:[%s378 + $0x30] sm:$0xff] %vm1492, %v1457
      %1500 = vst.msk [vmem:[%s378 + $0x38] sm:$0xff] %vm1492, %v1459
      %1501 = vst.msk [vmem:[%s378 + $0x40] sm:$0xff] %vm1492, %v1461
      %1502 = vst.msk [vmem:[%s378 + $0x48] sm:$0xff] %vm1492, %v1463
      %1503 = vst.msk [vmem:[%s378 + $0x50] sm:$0xff] %vm1492, %v1465
      %1504 = vst.msk [vmem:[%s378 + $0x58] sm:$0xff] %vm1492, %v1467
      %1505 = vst.msk [vmem:[%s378 + $0x60] sm:$0xff] %vm1492, %v1469
      %1506 = vst.msk [vmem:[%s378 + $0x68] sm:$0xff] %vm1492, %v1471
      %1507 = vst.msk [vmem:[%s378 + $0x70] sm:$0xff] %vm1492, %v1473
      %1508 = vst.msk [vmem:[%s378 + $0x78] sm:$0xff] %vm1492, %v1475
      %v1509 = vmul.f32 %v1008, %v1280
      %v1510 = vmul.f32 %v1009, %v1281
      %v1511 = vmul.f32 %v1010, %v1282
      %v1512 = vmul.f32 %v1011, %v1283
      %v1513 = vmul.f32 %v1012, %v1284
      %v1514 = vmul.f32 %v1013, %v1285
      %v1515 = vmul.f32 %v1014, %v1286
      %v1516 = vmul.f32 %v1015, %v1287
      %v1517 = vmul.f32 %v1016, %v1288
      %v1518 = vmul.f32 %v1017, %v1289
      %v1519 = vmul.f32 %v1018, %v1290
      %v1520 = vmul.f32 %v1019, %v1291
      %v1521 = vmul.f32 %v1020, %v1292
      %v1522 = vmul.f32 %v1021, %v1293
      %v1523 = vmul.f32 %v1022, %v1294
      %v1524 = vmul.f32 %v1023, %v1295
      %1525 = vrot.lane.b32.xlu0 %v1318, 80
      %v1526 = vpop.permute.xlu0 %1525
      %v1528 = vmul.f32 %v1509, %v1526
      %v1529 = vmul.f32 %v1510, %v1526
      %v1530 = vmul.f32 %v1511, %v1526
      %v1531 = vmul.f32 %v1512, %v1526
      %v1532 = vmul.f32 %v1513, %v1526
      %v1533 = vmul.f32 %v1514, %v1526
      %v1534 = vmul.f32 %v1515, %v1526
      %v1535 = vmul.f32 %v1516, %v1526
      %v1536 = vmul.f32 %v1517, %v1526
      %v1537 = vmul.f32 %v1518, %v1526
      %v1538 = vmul.f32 %v1519, %v1526
      %v1539 = vmul.f32 %v1520, %v1526
      %v1540 = vmul.f32 %v1521, %v1526
      %v1541 = vmul.f32 %v1522, %v1526
      %v1542 = vmul.f32 %v1523, %v1526
      %v1543 = vmul.f32 %v1524, %v1526
      %1544 = vrot.lane.b32.xlu0 %v1340, 80
      %v1545 = vpop.permute.xlu0 %1544
      %v1547 = vadd.f32 %v1528, %v1545
      %v1548 = vadd.f32 %v1529, %v1545
      %v1549 = vadd.f32 %v1530, %v1545
      %v1550 = vadd.f32 %v1531, %v1545
      %v1551 = vadd.f32 %v1532, %v1545
      %v1552 = vadd.f32 %v1533, %v1545
      %v1553 = vadd.f32 %v1534, %v1545
      %v1554 = vadd.f32 %v1535, %v1545
      %v1555 = vadd.f32 %v1536, %v1545
      %v1556 = vadd.f32 %v1537, %v1545
      %v1557 = vadd.f32 %v1538, %v1545
      %v1558 = vadd.f32 %v1539, %v1545
      %v1559 = vadd.f32 %v1540, %v1545
      %v1560 = vadd.f32 %v1541, %v1545
      %v1561 = vadd.f32 %v1542, %v1545
      %v1562 = vadd.f32 %v1543, %v1545
      %1579 = vrot.lane.b32.xlu0 %v1547, 48
      %v1580 = vpop.permute.xlu0 %1579
      %1581 = vrot.lane.b32.xlu0 %v1548, 48
      %v1582 = vpop.permute.xlu0 %1581
      %1583 = vrot.lane.b32.xlu0 %v1549, 48
      %v1584 = vpop.permute.xlu0 %1583
      %1585 = vrot.lane.b32.xlu0 %v1550, 48
      %v1586 = vpop.permute.xlu0 %1585
      %1587 = vrot.lane.b32.xlu0 %v1551, 48
      %v1588 = vpop.permute.xlu0 %1587
      %1589 = vrot.lane.b32.xlu0 %v1552, 48
      %v1590 = vpop.permute.xlu0 %1589
      %1591 = vrot.lane.b32.xlu0 %v1553, 48
      %v1592 = vpop.permute.xlu0 %1591
      %1593 = vrot.lane.b32.xlu0 %v1554, 48
      %v1594 = vpop.permute.xlu0 %1593
      %1595 = vrot.lane.b32.xlu0 %v1555, 48
      %v1596 = vpop.permute.xlu0 %1595
      %1597 = vrot.lane.b32.xlu0 %v1556, 48
      %v1598 = vpop.permute.xlu0 %1597
      %1599 = vrot.lane.b32.xlu0 %v1557, 48
      %v1600 = vpop.permute.xlu0 %1599
      %1601 = vrot.lane.b32.xlu0 %v1558, 48
      %v1602 = vpop.permute.xlu0 %1601
      %1603 = vrot.lane.b32.xlu0 %v1559, 48
      %v1604 = vpop.permute.xlu0 %1603
      %1605 = vrot.lane.b32.xlu0 %v1560, 48
      %v1606 = vpop.permute.xlu0 %1605
      %1607 = vrot.lane.b32.xlu0 %v1561, 48
      %v1608 = vpop.permute.xlu0 %1607
      %1609 = vrot.lane.b32.xlu0 %v1562, 48
      %v1610 = vpop.permute.xlu0 %1609
      %vm1627 = vcmask 523648
      %1628 = vst.msk [vmem:[%s378] sm:$0xff] %vm1627, %v1580
      %1629 = vst.msk [vmem:[%s378 + $0x8] sm:$0xff] %vm1627, %v1582
      %1630 = vst.msk [vmem:[%s378 + $0x10] sm:$0xff] %vm1627, %v1584
      %1631 = vst.msk [vmem:[%s378 + $0x18] sm:$0xff] %vm1627, %v1586
      %1632 = vst.msk [vmem:[%s378 + $0x20] sm:$0xff] %vm1627, %v1588
      %1633 = vst.msk [vmem:[%s378 + $0x28] sm:$0xff] %vm1627, %v1590
      %1634 = vst.msk [vmem:[%s378 + $0x30] sm:$0xff] %vm1627, %v1592
      %1635 = vst.msk [vmem:[%s378 + $0x38] sm:$0xff] %vm1627, %v1594
      %1636 = vst.msk [vmem:[%s378 + $0x40] sm:$0xff] %vm1627, %v1596
      %1637 = vst.msk [vmem:[%s378 + $0x48] sm:$0xff] %vm1627, %v1598
      %1638 = vst.msk [vmem:[%s378 + $0x50] sm:$0xff] %vm1627, %v1600
      %1639 = vst.msk [vmem:[%s378 + $0x58] sm:$0xff] %vm1627, %v1602
      %1640 = vst.msk [vmem:[%s378 + $0x60] sm:$0xff] %vm1627, %v1604
      %1641 = vst.msk [vmem:[%s378 + $0x68] sm:$0xff] %vm1627, %v1606
      %1642 = vst.msk [vmem:[%s378 + $0x70] sm:$0xff] %vm1627, %v1608
      %1643 = vst.msk [vmem:[%s378 + $0x78] sm:$0xff] %vm1627, %v1610
      %s1644 = smul.u32 16, %s20
      %p1645 = scmp.lt.s32.totalorder %s1644, 31
      %s1646 = scalar_select %p1645, %s1644, 31
      %s1647 = smul.addr %s1646, 8
      %s1648 = scalar_lea.vmem %s9, %s1647
      // Predicated region
      $region57: #{tpu_custom_call.1} parent=55 // pred_check
        %p1649 = pneg %p242
      $region58: #{tpu_custom_call.1} parent=55 // pred_check_branch
        %1651 = sbr.rel (%p1649) target = $region60
      $region59: #{tpu_custom_call.1} parent=55 // pred_region
        %s1652 = smul.u32 16, %s20
      $region60: #{tpu_custom_call.1} parent=55 // pred_fallthru
        _
    $region56: #{tpu_custom_call.1} parent=5 // pred_fallthru
      _
    %p1653 = scmp.le.s32.totalorder 2, %s15
    // Predicated region
    $region61: #{tpu_custom_call.1} parent=5 // pred_check
      %p1654 = pneg %p1653
    $region62: #{tpu_custom_call.1} parent=5 // pred_check_branch
      %1656 = sbr.rel (%p1654) target = $region64
    $region63: #{tpu_custom_call.1} parent=5 // pred_region
      %s1657 = ssub.s32 %s15, 2
      // Predicated region
      $region65: #{tpu_custom_call.1} parent=63 // pred_check
        %p1658 = pneg %p248
      $region66: #{tpu_custom_call.1} parent=63 // pred_check_branch
        %1660 = sbr.rel (%p1658) target = $region68
      $region67: #{tpu_custom_call.1} parent=63 // pred_region
        %s1661 = smul.u32 16, %s21
        %p1662 = scmp.lt.s32.totalorder %s1661, 31
        %s1663 = scalar_select %p1662, %s1661, 31
        %s1664 = smul.addr %s1663, 8
        %s1665 = scalar_lea.vmem %s9, %s1664
      $region68: #{tpu_custom_call.1} parent=63 // pred_fallthru
        _
    $region64: #{tpu_custom_call.1} parent=5 // pred_fallthru
      _
  $region6: #{tpu_custom_call.1} parent=0 // loop_footer
    %s19 = sadd.s32 1, %s15
  $region7: #{tpu_custom_call.1} parent=0 // loop_footer_branch
    %14 = sbr.rel target = $region3
  $region8: #{tpu_custom_call.1} parent=0 // loop_exit
    _

</llo_original>
